<compile_context>
chip_gen: v7x
topology: tpu7x:2x2x1
jax: 0.10.0
libtpu: 0.0.40
codegen_flags: <defaults>
</compile_context>

<pallas_src>
import functools
import math

import jax
import jax.numpy as jnp
from jax import lax
from jax.experimental import pallas as pl
from jax.experimental.pallas import tpu as pltpu


def _cross_attention_kernel(x_ref, y_ref,
                            wq_ref, bq_ref,
                            wk_ref, bk_ref,
                            wv_ref, bv_ref,
                            wo_ref, bo_ref,
                            o_ref,
                            k_s, v_s, acc_s,
                            *, n_heads: int):
    # x_ref:  (tq, C)        current batch element / query tile
    # y_ref:  (Ty, Dc)       current batch element (full context)
    # wq_ref: (H, C, hs)     softmax scale pre-folded in; bq_ref: (H, 1, hs)
    # wk_ref/wv_ref: (H, Dc, hs); bk_ref/bv_ref: (H, 1, hs)
    # wo_ref: (H, hs, C);    bo_ref: (1, C)
    # o_ref:  (tq, C)
    # k_s/v_s: (H, Ty, hs) VMEM scratch; acc_s: (tq, C) f32 VMEM scratch
    qt = pl.program_id(1)
    h = pl.program_id(2)
    cdt = x_ref.dtype

    # K/V projection for this head: computed once per batch element and
    # reused across all query tiles (q-tile axis is "arbitrary").
    @pl.when(qt == 0)
    def _():
        y = y_ref[...]
        k_s[h] = (jnp.dot(y, wk_ref[h], preferred_element_type=jnp.float32)
                  + bk_ref[h]).astype(cdt)
        v_s[h] = (jnp.dot(y, wv_ref[h], preferred_element_type=jnp.float32)
                  + bv_ref[h]).astype(cdt)

    # Fresh output-projection accumulator for this query tile.
    @pl.when(h == 0)
    def _():
        acc_s[...] = jnp.zeros_like(acc_s)

    # Q projection for this head / query tile (softmax scale already folded in).
    q_h = (jnp.dot(x_ref[...], wq_ref[h], preferred_element_type=jnp.float32)
           + bq_ref[h]).astype(cdt)                                    # (tq, hs)
    k_h = k_s[h]                                                       # (Ty, hs)
    v_h = v_s[h]                                                       # (Ty, hs)

    # Scores: contract the head dim of both operands (no K transpose copy).
    s = lax.dot_general(q_h, k_h,
                        dimension_numbers=(((1,), (1,)), ((), ())),
                        preferred_element_type=jnp.float32)            # (tq, Ty)
    s = s - jnp.max(s, axis=-1, keepdims=True)
    p = jnp.exp(s)
    p = p * pl.reciprocal(jnp.sum(p, axis=-1, keepdims=True), approx=True)

    o_h = jnp.dot(p.astype(cdt), v_h,
                  preferred_element_type=jnp.float32)                  # (tq, hs)

    # Output projection accumulated head by head (replaces concat + matmul):
    #   out = concat_h(o_h) @ Wo.T = sum_h o_h @ Wo.T[h*hs:(h+1)*hs, :]
    acc_s[...] += jnp.dot(o_h.astype(cdt), wo_ref[h],
                          preferred_element_type=jnp.float32)

    @pl.when(h == n_heads - 1)
    def _():
        o_ref[...] = (acc_s[...] + bo_ref[...]).astype(o_ref.dtype)


def cross_attention_pallas(x, y, params, *, n_heads: int, q_tile: int = 256):
    """x: (B, T, n_embed)  y: (B, Ty, d_cross)  -> (B, T, n_embed)."""
    B, T, C = x.shape
    By, Ty, Dc = y.shape
    assert By == B
    hs = C // n_heads
    assert hs * n_heads == C, "n_embed must be divisible by n_heads"

    tq = min(q_tile, T)
    assert T % tq == 0, "T must be divisible by the query tile"
    n_qt = T // tq

    dt = x.dtype
    scale = float(hs) ** -0.5

    # Per-head weight slabs, pre-transposed to (in, out) so the kernel does
    # plain `x @ W[h]`; the softmax scale is folded into the Q projection.
    def per_head_w(w):                      # (C_out, C_in) -> (H, C_in, hs)
        return jnp.transpose(w.reshape(n_heads, hs, -1), (0, 2, 1)).astype(dt)

    def per_head_b(b):                      # (C_out,) -> (H, 1, hs)
        return b.reshape(n_heads, 1, hs).astype(dt)

    wq = per_head_w(params["wq"] * scale)
    bq = per_head_b(params["bq"] * scale)
    wk = per_head_w(params["wk"])
    bk = per_head_b(params["bk"])
    wv = per_head_w(params["wv"])
    bv = per_head_b(params["bv"])
    wo = params["wo"].T.reshape(n_heads, hs, C).astype(dt)   # (H, hs, C)
    bo = params["bo"].reshape(1, C).astype(dt)

    kernel = functools.partial(_cross_attention_kernel, n_heads=n_heads)

    const = lambda shape: pl.BlockSpec(shape, lambda b, qt, h: (0,) * len(shape))

    return pl.pallas_call(
        kernel,
        out_shape=jax.ShapeDtypeStruct((B, T, C), x.dtype),
        grid_spec=pltpu.PrefetchScalarGridSpec(
            num_scalar_prefetch=0,
            grid=(B, n_qt, n_heads),
            in_specs=[
                pl.BlockSpec((None, tq, C), lambda b, qt, h: (b, qt, 0)),   # x
                pl.BlockSpec((None, Ty, Dc), lambda b, qt, h: (b, 0, 0)),   # y
                const((n_heads, C, hs)), const((n_heads, 1, hs)),           # wq, bq
                const((n_heads, Dc, hs)), const((n_heads, 1, hs)),          # wk, bk
                const((n_heads, Dc, hs)), const((n_heads, 1, hs)),          # wv, bv
                const((n_heads, hs, C)), const((1, C)),                     # wo, bo
            ],
            out_specs=pl.BlockSpec((None, tq, C), lambda b, qt, h: (b, qt, 0)),
            scratch_shapes=[
                pltpu.VMEM((n_heads, Ty, hs), dt),       # K cache (per batch elem)
                pltpu.VMEM((n_heads, Ty, hs), dt),       # V cache (per batch elem)
                pltpu.VMEM((tq, C), jnp.float32),        # out-proj accumulator
            ],
        ),
        compiler_params=pltpu.CompilerParams(
            dimension_semantics=("parallel", "arbitrary", "arbitrary"),
            vmem_limit_bytes=64 * 1024 * 1024,
        ),
    )(x, y, wq, bq, wk, bk, wv, bv, wo, bo)


def cross_attention_ref(x, y, params, *, n_heads: int):
    """Pure-JAX reference mirroring the PyTorch forward exactly."""
    B, T, C = x.shape
    Ty = y.shape[1]
    hs = C // n_heads
    q = x @ params["wq"].T + params["bq"]
    k = y @ params["wk"].T + params["bk"]
    v = y @ params["wv"].T + params["bv"]
    q = q.reshape(B, T, n_heads, hs).transpose(0, 2, 1, 3)
    k = k.reshape(B, Ty, n_heads, hs).transpose(0, 2, 1, 3)
    v = v.reshape(B, Ty, n_heads, hs).transpose(0, 2, 1, 3)
    w = jnp.einsum("bhtd,bhsd->bhts", q, k) * (hs ** -0.5)
    w = jax.nn.softmax(w, axis=-1)
    o = jnp.einsum("bhts,bhsd->bhtd", w, v)
    o = o.transpose(0, 2, 1, 3).reshape(B, T, C)
    return o @ params["wo"].T + params["bo"]


def _init_linear(key, in_f, out_f):
    # PyTorch nn.Linear default init: U(-1/sqrt(in), 1/sqrt(in)) for W and b.
    k1, k2 = jax.random.split(key)
    bound = 1.0 / math.sqrt(in_f)
    w = jax.random.uniform(k1, (out_f, in_f), jnp.float32, -bound, bound)
    b = jax.random.uniform(k2, (out_f,), jnp.float32, -bound, bound)
    return w, b


if __name__ == "__main__":
    n_heads = 2
    n_embed = 256          # head_size = 128: lane-aligned tiles for the MXU
    d_cross = 128
    B, T, Ty = 2, 128, 128

    root = jax.random.PRNGKey(0)
    kq, kk, kv, ko, kx, ky = jax.random.split(root, 6)

    wq, bq = _init_linear(kq, n_embed, n_embed)
    wk, bk = _init_linear(kk, d_cross, n_embed)
    wv, bv = _init_linear(kv, d_cross, n_embed)
    wo, bo = _init_linear(ko, n_embed, n_embed)
    params = dict(wq=wq, bq=bq, wk=wk, bk=bk, wv=wv, bv=bv, wo=wo, bo=bo)

    x = jax.random.normal(kx, (B, T, n_embed), jnp.float32)
    y = jax.random.normal(ky, (B, Ty, d_cross), jnp.float32)

    out = cross_attention_pallas(x, y, params, n_heads=n_heads)
    out = jax.block_until_ready(out)

    ref = cross_attention_ref(x, y, params, n_heads=n_heads)
    assert out.shape == (B, T, n_embed)
    err = float(jnp.max(jnp.abs(out - ref)))
    assert jnp.allclose(out, ref, atol=2e-3, rtol=2e-3), f"mismatch vs reference (max abs err {err})"

    print("KERNEL_OK")
</pallas_src>

<mosaic_0001>
module attributes {stable_mosaic.version = 11 : i64} {
  func.func @_cross_attention_kernel(%arg0: i32, %arg1: i32, %arg2: i32, %arg3: memref<1x128x256xf32, #tpu.memory_space<vmem>>, %arg4: memref<1x128x128xf32, #tpu.memory_space<vmem>>, %arg5: memref<2x256x128xf32, #tpu.memory_space<vmem>>, %arg6: memref<2x1x128xf32, #tpu.memory_space<vmem>>, %arg7: memref<2x128x128xf32, #tpu.memory_space<vmem>>, %arg8: memref<2x1x128xf32, #tpu.memory_space<vmem>>, %arg9: memref<2x128x128xf32, #tpu.memory_space<vmem>>, %arg10: memref<2x1x128xf32, #tpu.memory_space<vmem>>, %arg11: memref<2x128x256xf32, #tpu.memory_space<vmem>>, %arg12: memref<1x256xf32, #tpu.memory_space<vmem>>, %arg13: memref<1x128x256xf32, #tpu.memory_space<vmem>>, %arg14: memref<2x128x128xf32, #tpu.memory_space<vmem>>, %arg15: memref<2x128x128xf32, #tpu.memory_space<vmem>>, %arg16: memref<128x256xf32, #tpu.memory_space<vmem>>) attributes {dimension_semantics = [#tpu.dimension_semantics<parallel>, #tpu.dimension_semantics<arbitrary>, #tpu.dimension_semantics<arbitrary>], iteration_bounds = array<i64: 2, 1, 2>, scalar_prefetch = 0 : i64, scratch_operands = 3 : i64, tpu.core_type = #tpu.core_type<tc>, window_params = [{transform_indices = @transform_0, window_bounds = array<i64: 1, 128, 256>}, {transform_indices = @transform_1, window_bounds = array<i64: 1, 128, 128>}, {pipeline_mode = #tpu.pipeline_mode<synchronous>, transform_indices = @transform_2, window_bounds = array<i64: 2, 256, 128>}, {pipeline_mode = #tpu.pipeline_mode<synchronous>, transform_indices = @transform_3, window_bounds = array<i64: 2, 1, 128>}, {pipeline_mode = #tpu.pipeline_mode<synchronous>, transform_indices = @transform_4, window_bounds = array<i64: 2, 128, 128>}, {pipeline_mode = #tpu.pipeline_mode<synchronous>, transform_indices = @transform_5, window_bounds = array<i64: 2, 1, 128>}, {pipeline_mode = #tpu.pipeline_mode<synchronous>, transform_indices = @transform_6, window_bounds = array<i64: 2, 128, 128>}, {pipeline_mode = #tpu.pipeline_mode<synchronous>, transform_indices = @transform_7, window_bounds = array<i64: 2, 1, 128>}, {pipeline_mode = #tpu.pipeline_mode<synchronous>, transform_indices = @transform_8, window_bounds = array<i64: 2, 128, 256>}, {pipeline_mode = #tpu.pipeline_mode<synchronous>, transform_indices = @transform_9, window_bounds = array<i64: 1, 256>}, {transform_indices = @transform_10, window_bounds = array<i64: 1, 128, 256>}]} {
    %c0_i32 = arith.constant 0 : i32
    %0 = arith.cmpi eq, %arg1, %c0_i32 : i32
    %1 = arith.extui %0 : i1 to i32
    %c0_i32_0 = arith.constant 0 : i32
    %2 = arith.cmpi ne, %1, %c0_i32_0 : i32
    scf.if %2 {
      %c0_25 = arith.constant 0 : index
      %c0_26 = arith.constant 0 : index
      %c0_27 = arith.constant 0 : index
      %45 = vector.load %arg4[%c0_25, %c0_26, %c0_27] : memref<1x128x128xf32, #tpu.memory_space<vmem>>, vector<1x128x128xf32>
      %46 = vector.shape_cast %45 : vector<1x128x128xf32> to vector<128x128xf32>
      %47 = arith.index_cast %arg2 : i32 to index
      %c0_28 = arith.constant 0 : index
      %c0_29 = arith.constant 0 : index
      %48 = vector.load %arg7[%47, %c0_28, %c0_29] : memref<2x128x128xf32, #tpu.memory_space<vmem>>, vector<1x128x128xf32>
      %49 = vector.shape_cast %48 : vector<1x128x128xf32> to vector<128x128xf32>
      %cst_30 = arith.constant dense<0.000000e+00> : vector<128x128xf32>
      %50 = tpu.matmul %46, %49, %cst_30 {dimension_numbers = #tpu.dot_dimension_numbers<[1], [0], [0], [1], [0, 0, 1, 1], [], []>} : vector<128x128xf32>, vector<128x128xf32>, vector<128x128xf32> -> vector<128x128xf32>
      %51 = arith.index_cast %arg2 : i32 to index
      %c0_31 = arith.constant 0 : index
      %c0_32 = arith.constant 0 : index
      %52 = vector.load %arg8[%51, %c0_31, %c0_32] : memref<2x1x128xf32, #tpu.memory_space<vmem>>, vector<1x1x128xf32>
      %53 = vector.shape_cast %52 : vector<1x1x128xf32> to vector<1x128xf32>
      %54 = vector.broadcast %53 : vector<1x128xf32> to vector<128x128xf32>
      %55 = arith.addf %50, %54 : vector<128x128xf32>
      %56 = arith.index_cast %arg2 : i32 to index
      %c0_33 = arith.constant 0 : index
      %c0_34 = arith.constant 0 : index
      %57 = vector.load %arg14[%56, %c0_33, %c0_34] : memref<2x128x128xf32, #tpu.memory_space<vmem>>, vector<1x128x128xf32>
      %58 = vector.shape_cast %57 : vector<1x128x128xf32> to vector<128x128xf32>
      %59 = vector.shape_cast %55 : vector<128x128xf32> to vector<1x128x128xf32>
      tpu.vector_store %arg14[%56, %c0_33, %c0_34], %59 {strides = array<i32>} : memref<2x128x128xf32, #tpu.memory_space<vmem>>, vector<1x128x128xf32>,
      %60 = arith.index_cast %arg2 : i32 to index
      %c0_35 = arith.constant 0 : index
      %c0_36 = arith.constant 0 : index
      %61 = vector.load %arg9[%60, %c0_35, %c0_36] : memref<2x128x128xf32, #tpu.memory_space<vmem>>, vector<1x128x128xf32>
      %62 = vector.shape_cast %61 : vector<1x128x128xf32> to vector<128x128xf32>
      %cst_37 = arith.constant dense<0.000000e+00> : vector<128x128xf32>
      %63 = tpu.matmul %46, %62, %cst_37 {dimension_numbers = #tpu.dot_dimension_numbers<[1], [0], [0], [1], [0, 0, 1, 1], [], []>} : vector<128x128xf32>, vector<128x128xf32>, vector<128x128xf32> -> vector<128x128xf32>
      %64 = arith.index_cast %arg2 : i32 to index
      %c0_38 = arith.constant 0 : index
      %c0_39 = arith.constant 0 : index
      %65 = vector.load %arg10[%64, %c0_38, %c0_39] : memref<2x1x128xf32, #tpu.memory_space<vmem>>, vector<1x1x128xf32>
      %66 = vector.shape_cast %65 : vector<1x1x128xf32> to vector<1x128xf32>
      %67 = vector.broadcast %66 : vector<1x128xf32> to vector<128x128xf32>
      %68 = arith.addf %63, %67 : vector<128x128xf32>
      %69 = arith.index_cast %arg2 : i32 to index
      %c0_40 = arith.constant 0 : index
      %c0_41 = arith.constant 0 : index
      %70 = vector.load %arg15[%69, %c0_40, %c0_41] : memref<2x128x128xf32, #tpu.memory_space<vmem>>, vector<1x128x128xf32>
      %71 = vector.shape_cast %70 : vector<1x128x128xf32> to vector<128x128xf32>
      %72 = vector.shape_cast %68 : vector<128x128xf32> to vector<1x128x128xf32>
      tpu.vector_store %arg15[%69, %c0_40, %c0_41], %72 {strides = array<i32>} : memref<2x128x128xf32, #tpu.memory_space<vmem>>, vector<1x128x128xf32>,
    } else {
    }
    %c0_i32_1 = arith.constant 0 : i32
    %3 = arith.cmpi eq, %arg2, %c0_i32_1 : i32
    %4 = arith.extui %3 : i1 to i32
    %c0_i32_2 = arith.constant 0 : i32
    %5 = arith.cmpi ne, %4, %c0_i32_2 : i32
    scf.if %5 {
      %cst_25 = arith.constant 0.000000e+00 : f32
      %45 = vector.broadcast %cst_25 : f32 to vector<128x256xf32>
      %c0_26 = arith.constant 0 : index
      %c0_27 = arith.constant 0 : index
      %46 = vector.load %arg16[%c0_26, %c0_27] : memref<128x256xf32, #tpu.memory_space<vmem>>, vector<128x256xf32>
      tpu.vector_store %arg16[%c0_26, %c0_27], %45 {strides = array<i32>} : memref<128x256xf32, #tpu.memory_space<vmem>>, vector<128x256xf32>,
    } else {
    }
    %c0 = arith.constant 0 : index
    %c0_3 = arith.constant 0 : index
    %c0_4 = arith.constant 0 : index
    %6 = vector.load %arg3[%c0, %c0_3, %c0_4] : memref<1x128x256xf32, #tpu.memory_space<vmem>>, vector<1x128x256xf32>
    %7 = vector.shape_cast %6 : vector<1x128x256xf32> to vector<128x256xf32>
    %8 = arith.index_cast %arg2 : i32 to index
    %c0_5 = arith.constant 0 : index
    %c0_6 = arith.constant 0 : index
    %9 = vector.load %arg5[%8, %c0_5, %c0_6] : memref<2x256x128xf32, #tpu.memory_space<vmem>>, vector<1x256x128xf32>
    %10 = vector.shape_cast %9 : vector<1x256x128xf32> to vector<256x128xf32>
    %cst = arith.constant dense<0.000000e+00> : vector<128x128xf32>
    %11 = tpu.matmul %7, %10, %cst {dimension_numbers = #tpu.dot_dimension_numbers<[1], [0], [0], [1], [0, 0, 1, 1], [], []>} : vector<128x256xf32>, vector<256x128xf32>, vector<128x128xf32> -> vector<128x128xf32>
    %12 = arith.index_cast %arg2 : i32 to index
    %c0_7 = arith.constant 0 : index
    %c0_8 = arith.constant 0 : index
    %13 = vector.load %arg6[%12, %c0_7, %c0_8] : memref<2x1x128xf32, #tpu.memory_space<vmem>>, vector<1x1x128xf32>
    %14 = vector.shape_cast %13 : vector<1x1x128xf32> to vector<1x128xf32>
    %15 = vector.broadcast %14 : vector<1x128xf32> to vector<128x128xf32>
    %16 = arith.addf %11, %15 : vector<128x128xf32>
    %17 = arith.index_cast %arg2 : i32 to index
    %c0_9 = arith.constant 0 : index
    %c0_10 = arith.constant 0 : index
    %18 = vector.load %arg14[%17, %c0_9, %c0_10] : memref<2x128x128xf32, #tpu.memory_space<vmem>>, vector<1x128x128xf32>
    %19 = vector.shape_cast %18 : vector<1x128x128xf32> to vector<128x128xf32>
    %20 = arith.index_cast %arg2 : i32 to index
    %c0_11 = arith.constant 0 : index
    %c0_12 = arith.constant 0 : index
    %21 = vector.load %arg15[%20, %c0_11, %c0_12] : memref<2x128x128xf32, #tpu.memory_space<vmem>>, vector<1x128x128xf32>
    %22 = vector.shape_cast %21 : vector<1x128x128xf32> to vector<128x128xf32>
    %cst_13 = arith.constant dense<0.000000e+00> : vector<128x128xf32>
    %23 = tpu.matmul %16, %19, %cst_13 {dimension_numbers = #tpu.dot_dimension_numbers<[1], [1], [0], [0], [0, 0, 1, 0], [], []>} : vector<128x128xf32>, vector<128x128xf32>, vector<128x128xf32> -> vector<128x128xf32>
    %cst_14 = arith.constant dense<0xFF800000> : vector<128xf32>
    %24 = vector.multi_reduction <maximumf>, %23, %cst_14 [1] : vector<128x128xf32> to vector<128xf32>
    %25 = vector.shape_cast %24 : vector<128xf32> to vector<128x1xf32>
    %26 = vector.broadcast %25 : vector<128x1xf32> to vector<128x128xf32>
    %27 = arith.subf %23, %26 : vector<128x128xf32>
    %28 = math.exp %27 : vector<128x128xf32>
    %cst_15 = arith.constant dense<0.000000e+00> : vector<128xf32>
    %29 = vector.multi_reduction <add>, %28, %cst_15 [1] : vector<128x128xf32> to vector<128xf32>
    %30 = vector.shape_cast %29 : vector<128xf32> to vector<128x1xf32>
    %31 = tpu.reciprocal %30 {approx = true} : vector<128x1xf32> -> vector<128x1xf32>
    %32 = vector.broadcast %31 : vector<128x1xf32> to vector<128x128xf32>
    %33 = arith.mulf %28, %32 : vector<128x128xf32>
    %cst_16 = arith.constant dense<0.000000e+00> : vector<128x128xf32>
    %34 = tpu.matmul %33, %22, %cst_16 {dimension_numbers = #tpu.dot_dimension_numbers<[1], [0], [0], [1], [0, 0, 1, 1], [], []>} : vector<128x128xf32>, vector<128x128xf32>, vector<128x128xf32> -> vector<128x128xf32>
    %c0_17 = arith.constant 0 : index
    %c0_18 = arith.constant 0 : index
    %35 = vector.load %arg16[%c0_17, %c0_18] : memref<128x256xf32, #tpu.memory_space<vmem>>, vector<128x256xf32>
    %36 = arith.index_cast %arg2 : i32 to index
    %c0_19 = arith.constant 0 : index
    %c0_20 = arith.constant 0 : index
    %37 = vector.load %arg11[%36, %c0_19, %c0_20] : memref<2x128x256xf32, #tpu.memory_space<vmem>>, vector<1x128x256xf32>
    %38 = vector.shape_cast %37 : vector<1x128x256xf32> to vector<128x256xf32>
    %cst_21 = arith.constant dense<0.000000e+00> : vector<128x256xf32>
    %39 = tpu.matmul %34, %38, %cst_21 {dimension_numbers = #tpu.dot_dimension_numbers<[1], [0], [0], [1], [0, 0, 1, 1], [], []>} : vector<128x128xf32>, vector<128x256xf32>, vector<128x256xf32> -> vector<128x256xf32>
    %40 = arith.addf %35, %39 : vector<128x256xf32>
    %c0_22 = arith.constant 0 : index
    %c0_23 = arith.constant 0 : index
    %41 = vector.load %arg16[%c0_22, %c0_23] : memref<128x256xf32, #tpu.memory_space<vmem>>, vector<128x256xf32>
    tpu.vector_store %arg16[%c0_22, %c0_23], %40 {strides = array<i32>} : memref<128x256xf32, #tpu.memory_space<vmem>>, vector<128x256xf32>,
    %c1_i32 = arith.constant 1 : i32
    %42 = arith.cmpi eq, %arg2, %c1_i32 : i32
    %43 = arith.extui %42 : i1 to i32
    %c0_i32_24 = arith.constant 0 : i32
    %44 = arith.cmpi ne, %43, %c0_i32_24 : i32
    scf.if %44 {
      %c0_25 = arith.constant 0 : index
      %c0_26 = arith.constant 0 : index
      %45 = vector.load %arg16[%c0_25, %c0_26] : memref<128x256xf32, #tpu.memory_space<vmem>>, vector<128x256xf32>
      %c0_27 = arith.constant 0 : index
      %c0_28 = arith.constant 0 : index
      %46 = vector.load %arg12[%c0_27, %c0_28] : memref<1x256xf32, #tpu.memory_space<vmem>>, vector<1x256xf32>
      %47 = vector.broadcast %46 : vector<1x256xf32> to vector<128x256xf32>
      %48 = arith.addf %45, %47 : vector<128x256xf32>
      %c0_29 = arith.constant 0 : index
      %c0_30 = arith.constant 0 : index
      %c0_31 = arith.constant 0 : index
      %49 = vector.load %arg13[%c0_29, %c0_30, %c0_31] : memref<1x128x256xf32, #tpu.memory_space<vmem>>, vector<1x128x256xf32>
      %50 = vector.shape_cast %49 : vector<1x128x256xf32> to vector<128x256xf32>
      %51 = vector.shape_cast %48 : vector<128x256xf32> to vector<1x128x256xf32>
      tpu.vector_store %arg13[%c0_29, %c0_30, %c0_31], %51 {strides = array<i32>} : memref<1x128x256xf32, #tpu.memory_space<vmem>>, vector<1x128x256xf32>,
    } else {
    }
    return
  }
  func.func @transform_0(%arg0: i32, %arg1: i32, %arg2: i32) -> (i32, i32, i32) {
    %c0_i32 = arith.constant 0 : i32
    %c0_i32_0 = arith.constant 0 : i32
    return %arg0, %arg1, %c0_i32 : i32, i32, i32
  }
  func.func @transform_1(%arg0: i32, %arg1: i32, %arg2: i32) -> (i32, i32, i32) {
    %c0_i32 = arith.constant 0 : i32
    %c0_i32_0 = arith.constant 0 : i32
    %c0_i32_1 = arith.constant 0 : i32
    return %arg0, %c0_i32, %c0_i32_0 : i32, i32, i32
  }
  func.func @transform_2(%arg0: i32, %arg1: i32, %arg2: i32) -> (i32, i32, i32) {
    %c0_i32 = arith.constant 0 : i32
    %c0_i32_0 = arith.constant 0 : i32
    %c0_i32_1 = arith.constant 0 : i32
    %c0_i32_2 = arith.constant 0 : i32
    return %c0_i32, %c0_i32_0, %c0_i32_1 : i32, i32, i32
  }
  func.func @transform_3(%arg0: i32, %arg1: i32, %arg2: i32) -> (i32, i32, i32) {
    %c0_i32 = arith.constant 0 : i32
    %c0_i32_0 = arith.constant 0 : i32
    %c0_i32_1 = arith.constant 0 : i32
    %c0_i32_2 = arith.constant 0 : i32
    return %c0_i32, %c0_i32_0, %c0_i32_1 : i32, i32, i32
  }
  func.func @transform_4(%arg0: i32, %arg1: i32, %arg2: i32) -> (i32, i32, i32) {
    %c0_i32 = arith.constant 0 : i32
    %c0_i32_0 = arith.constant 0 : i32
    %c0_i32_1 = arith.constant 0 : i32
    %c0_i32_2 = arith.constant 0 : i32
    return %c0_i32, %c0_i32_0, %c0_i32_1 : i32, i32, i32
  }
  func.func @transform_5(%arg0: i32, %arg1: i32, %arg2: i32) -> (i32, i32, i32) {
    %c0_i32 = arith.constant 0 : i32
    %c0_i32_0 = arith.constant 0 : i32
    %c0_i32_1 = arith.constant 0 : i32
    %c0_i32_2 = arith.constant 0 : i32
    return %c0_i32, %c0_i32_0, %c0_i32_1 : i32, i32, i32
  }
  func.func @transform_6(%arg0: i32, %arg1: i32, %arg2: i32) -> (i32, i32, i32) {
    %c0_i32 = arith.constant 0 : i32
    %c0_i32_0 = arith.constant 0 : i32
    %c0_i32_1 = arith.constant 0 : i32
    %c0_i32_2 = arith.constant 0 : i32
    return %c0_i32, %c0_i32_0, %c0_i32_1 : i32, i32, i32
  }
  func.func @transform_7(%arg0: i32, %arg1: i32, %arg2: i32) -> (i32, i32, i32) {
    %c0_i32 = arith.constant 0 : i32
    %c0_i32_0 = arith.constant 0 : i32
    %c0_i32_1 = arith.constant 0 : i32
    %c0_i32_2 = arith.constant 0 : i32
    return %c0_i32, %c0_i32_0, %c0_i32_1 : i32, i32, i32
  }
  func.func @transform_8(%arg0: i32, %arg1: i32, %arg2: i32) -> (i32, i32, i32) {
    %c0_i32 = arith.constant 0 : i32
    %c0_i32_0 = arith.constant 0 : i32
    %c0_i32_1 = arith.constant 0 : i32
    %c0_i32_2 = arith.constant 0 : i32
    return %c0_i32, %c0_i32_0, %c0_i32_1 : i32, i32, i32
  }
  func.func @transform_9(%arg0: i32, %arg1: i32, %arg2: i32) -> (i32, i32) {
    %c0_i32 = arith.constant 0 : i32
    %c0_i32_0 = arith.constant 0 : i32
    %c0_i32_1 = arith.constant 0 : i32
    return %c0_i32, %c0_i32_0 : i32, i32
  }
  func.func @transform_10(%arg0: i32, %arg1: i32, %arg2: i32) -> (i32, i32, i32) {
    %c0_i32 = arith.constant 0 : i32
    %c0_i32_0 = arith.constant 0 : i32
    return %arg0, %arg1, %c0_i32 : i32, i32, i32
  }
}

</mosaic_0001>

<llo_original>
// kernel: tpu_custom_call.1
$region0: #{tpu_custom_call.1}
  #allocation0 [shape = 'u32[]', space=smem, size = 0x4, offset = 0x4, fixed_abs, tag = 'smem constant byte address 0x4 - core index']
  #allocation1 [shape = 'u32[144,128]{1,0:T(1,128)}', space=vmem, size = 0x12000, scoped, tag = 'internal scratch']
  #allocation2 [shape = 'f32[2,128,128]{2,1,0:T(8,128)}', space=vmem, size = 0x20000, scoped, tag = 'scratch operand']
  #allocation3 [shape = 'f32[2,128,128]{2,1,0:T(8,128)}', space=vmem, size = 0x20000, scoped, tag = 'scratch operand']
  #allocation4 [shape = 'f32[128,256]{1,0:T(8,128)}', space=vmem, size = 0x20000, scoped, tag = 'scratch operand']
  %s0 = inlined_call_operand.hbm [shape: f32[2,128,256], index: 0, kind: input, shape index: {}]
  %s1 = inlined_call_operand.hbm [shape: f32[2,128,128], index: 1, kind: input, shape index: {}]
  %s2 = inlined_call_operand.hbm [shape: f32[2,256,128], index: 2, kind: input, shape index: {}]
  %s3 = inlined_call_operand.hbm [shape: f32[2,1,128], index: 3, kind: input, shape index: {}]
  %s4 = inlined_call_operand.hbm [shape: f32[2,128,128], index: 4, kind: input, shape index: {}]
  %s5 = inlined_call_operand.hbm [shape: f32[2,1,128], index: 5, kind: input, shape index: {}]
  %s6 = inlined_call_operand.hbm [shape: f32[2,128,128], index: 6, kind: input, shape index: {}]
  %s7 = inlined_call_operand.hbm [shape: f32[2,1,128], index: 7, kind: input, shape index: {}]
  %s8 = inlined_call_operand.hbm [shape: f32[2,128,256], index: 8, kind: input, shape index: {}]
  %s9 = inlined_call_operand.hbm [shape: f32[1,256], index: 9, kind: input, shape index: {}]
  %s10 = inlined_call_operand.hbm [shape: f32[2,128,256], index: 10, kind: output, shape index: {}]
  %s11 = sld [smem:[#allocation0]]
  $region125: #{tpu_custom_call.1} parent=0
    _
  %s13 = ssub.s32 1, %s11
  %s14 = scalar_select 0, %s13, %s11
  $region1: #{tpu_custom_call.1} parent=0
    #allocation5 [shape = 'u8[262144]{0}', space=vmem, size = 0x40000, scoped, tag = 'input window, operand 0']
    #allocation6 [shape = 's32[2]{0}', space=sflag, size = 0x8, scoped, tag = 'scoped memory for tpu_custom_call.1']
    #allocation7 [shape = 's32[2]{0}', space=sflag, size = 0x8, scoped, tag = 'scoped memory for tpu_custom_call.1']
    #allocation8 [shape = 'u8[131072]{0}', space=vmem, size = 0x20000, scoped, tag = 'input window, operand 1']
    #allocation9 [shape = 's32[2]{0}', space=sflag, size = 0x8, scoped, tag = 'scoped memory for tpu_custom_call.1']
    #allocation10 [shape = 'u8[262144]{0}', space=vmem, size = 0x40000, scoped, tag = 'input window, operand 2, single buffered']
    #allocation11 [shape = 'u8[1024]{0}', space=vmem, size = 0x400, scoped, tag = 'input window, operand 3, single buffered']
    #allocation12 [shape = 's32[1]{0}', space=sflag, size = 0x4, scoped, tag = 'scoped memory for tpu_custom_call.1']
    #allocation13 [shape = 'u8[131072]{0}', space=vmem, size = 0x20000, scoped, tag = 'input window, operand 4, single buffered']
    #allocation14 [shape = 'u8[1024]{0}', space=vmem, size = 0x400, scoped, tag = 'input window, operand 5, single buffered']
    #allocation15 [shape = 's32[1]{0}', space=sflag, size = 0x4, scoped, tag = 'scoped memory for tpu_custom_call.1']
    #allocation16 [shape = 'u8[131072]{0}', space=vmem, size = 0x20000, scoped, tag = 'input window, operand 6, single buffered']
    #allocation17 [shape = 'u8[1024]{0}', space=vmem, size = 0x400, scoped, tag = 'input window, operand 7, single buffered']
    #allocation18 [shape = 's32[1]{0}', space=sflag, size = 0x4, scoped, tag = 'scoped memory for tpu_custom_call.1']
    #allocation19 [shape = 'u8[262144]{0}', space=vmem, size = 0x40000, scoped, tag = 'input window, operand 8, single buffered']
    #allocation20 [shape = 'u8[1024]{0}', space=vmem, size = 0x400, scoped, tag = 'input window, operand 9, single buffered']
    #allocation21 [shape = 's32[1]{0}', space=sflag, size = 0x4, scoped, tag = 'scoped memory for tpu_custom_call.1']
    #allocation22 [shape = 'u8[262144]{0}', space=vmem, size = 0x40000, scoped, tag = 'output window, operand 0']
    %15 = vsyncpa [#allocation6], 0
    %s16 = scalar_lea.sflag [#allocation6], 1
    %17 = vsyncpa %s16, 0
    %18 = vsyncpa [#allocation9], 0
    %s19 = scalar_lea.sflag [#allocation9], 1
    %20 = vsyncpa %s19, 0
    %21 = vsyncpa [#allocation12], 0
    %22 = vsyncpa [#allocation15], 0
    %23 = vsyncpa [#allocation18], 0
    %24 = vsyncpa [#allocation21], 0
    %25 = vsyncpa [#allocation7], 0
    %s26 = scalar_lea.sflag [#allocation7], 1
    %27 = vsyncpa %s26, 0
    loop: start=0, step=1, limit=6
    $region2: #{tpu_custom_call.1} parent=1 // loop_pre_header
      _
    $region3: #{tpu_custom_call.1} parent=1 // loop_header
      %s29 = sphi 0, %s33
      %p30 = scmp.ge.s32.totalorder %s29, 6
      %s36 = sphi 0, %s55
      %s37 = sphi 0, %s51
      %s38 = sphi 0, %s47
      %s39 = sphi 0, %s36
      %s40 = sphi 0, %s37
      %s41 = sphi 0, %s38
      %s42 = sphi 0, %s39
      %s43 = sphi 0, %s40
      %s44 = sphi 0, %s41
      %s60 = sphi 0, %s62
      %s63 = sphi 0, %s60
      %s64 = sphi 0, %s63
      %s80 = sphi 0, %s64
      %s86 = sphi 0, %s88
      %s89 = sphi 0, %s86
      %s90 = sphi 0, %s89
      %s106 = sphi 0, %s90
      %s110 = sphi 0, %s110
      %s112 = sphi 0, %s110
      %s113 = sphi 0, %s112
      %s127 = sphi 0, %s113
      %s131 = sphi 0, %s131
      %s133 = sphi 0, %s131
      %s134 = sphi 0, %s133
      %s148 = sphi 0, %s134
      %s152 = sphi 0, %s152
      %s154 = sphi 0, %s152
      %s155 = sphi 0, %s154
      %s169 = sphi 0, %s155
      %s173 = sphi 0, %s173
      %s175 = sphi 0, %s173
      %s176 = sphi 0, %s175
      %s190 = sphi 0, %s176
      %s194 = sphi 0, %s194
      %s196 = sphi 0, %s194
      %s197 = sphi 0, %s196
      %s211 = sphi 0, %s197
      %s215 = sphi 0, %s215
      %s217 = sphi 0, %s215
      %s218 = sphi 0, %s217
      %s232 = sphi 0, %s218
      %s236 = sphi 0, %s236
      %s238 = sphi 0, %s236
      %s239 = sphi 0, %s238
      %s253 = sphi 0, %s239
      %s257 = sphi 0, %s257
      %s259 = sphi 0, %s257
      %s260 = sphi 0, %s259
      %s274 = sphi 0, %s260
      %s282 = sphi 0, %s284
      %s285 = sphi 0, %s282
      %s286 = sphi 0, %s285
      %s302 = sphi 0, %s286
    $region4: #{tpu_custom_call.1} parent=1 // loop_header_branch
      %32 = sbr.rel (%p30) target = $region8
    $region5: #{tpu_custom_call.1} parent=1 // loop_body
      %s34 = ssub.s32 %s29, 1
      %s35 = ssub.s32 %s29, 2
      %s45 = sadd.s32 1, %s38
      %p46 = scmp.ge.s32.totalorder %s45, 2
      %s47 = scalar_select %p46, 0, %s45
      %s48 = sadd.s32 1, %s37
      %s49 = scalar_select %p46, %s48, %s37
      %p50 = scmp.ge.s32.totalorder %s49, 1
      %s51 = scalar_select %p50, 0, %s49
      %s52 = sadd.s32 1, %s36
      %s53 = scalar_select %p50, %s52, %s36
      %p54 = scmp.ge.s32.totalorder %s53, 2
      %s55 = scalar_select %p54, 0, %s53
      %s56 = ssub.s32 %s36, %s55
      %s57 = ssub.s32 %s37, %s51
      %s58 = sor.u32 %s56, %s57
      %p59 = scmp.eq.s32.totalorder %s58, 0
      %s61 = sadd.s32 %s60, 1
      %s62 = scalar_select %p59, %s60, %s61
      %p65 = pneg %p59
      %p66 = scmp.eq.s32.totalorder %s29, 3
      %p67 = por %p65, %p66
      %p68 = scmp.ne.s32.totalorder %s60, %s63
      %p69 = scmp.eq.s32.totalorder %s29, 0
      %p70 = por %p68, %p69
      %p71 = scmp.ne.s32.totalorder %s60, %s63
      %p72 = scmp.eq.s32.totalorder %s34, 3
      %p73 = por %p71, %p72
      %p74 = scmp.ne.s32.totalorder %s63, %s64
      %p75 = scmp.eq.s32.totalorder %s34, 0
      %p76 = por %p74, %p75
      %p77 = scmp.ne.s32.totalorder %s63, %s64
      %p78 = scmp.eq.s32.totalorder %s35, 3
      %p79 = por %p77, %p78
      %p81 = scmp.ne.s32.totalorder %s64, %s80
      %p82 = scmp.eq.s32.totalorder %s35, 0
      %p83 = por %p81, %p82
      %s84 = ssub.s32 %s36, %s55
      %p85 = scmp.eq.s32.totalorder %s84, 0
      %s87 = sadd.s32 %s86, 1
      %s88 = scalar_select %p85, %s86, %s87
      %p91 = pneg %p85
      %p92 = scmp.eq.s32.totalorder %s29, 3
      %p93 = por %p91, %p92
      %p94 = scmp.ne.s32.totalorder %s86, %s89
      %p95 = scmp.eq.s32.totalorder %s29, 0
      %p96 = por %p94, %p95
      %p97 = scmp.ne.s32.totalorder %s86, %s89
      %p98 = scmp.eq.s32.totalorder %s34, 3
      %p99 = por %p97, %p98
      %p100 = scmp.ne.s32.totalorder %s89, %s90
      %p101 = scmp.eq.s32.totalorder %s34, 0
      %p102 = por %p100, %p101
      %p103 = scmp.ne.s32.totalorder %s89, %s90
      %p104 = scmp.eq.s32.totalorder %s35, 3
      %p105 = por %p103, %p104
      %p107 = scmp.ne.s32.totalorder %s90, %s106
      %p108 = scmp.eq.s32.totalorder %s35, 0
      %p109 = por %p107, %p108
      %s111 = sadd.s32 %s110, 1
      %p114 = scmp.eq.s32.totalorder %s29, 3
      %p115 = scmp.ne.s32.totalorder %s110, %s112
      %p116 = scmp.eq.s32.totalorder %s29, 0
      %p117 = por %p115, %p116
      %p118 = scmp.ne.s32.totalorder %s110, %s112
      %p119 = scmp.eq.s32.totalorder %s34, 3
      %p120 = por %p118, %p119
      %p121 = scmp.ne.s32.totalorder %s112, %s113
      %p122 = scmp.eq.s32.totalorder %s34, 0
      %p123 = por %p121, %p122
      %p124 = scmp.ne.s32.totalorder %s112, %s113
      %p125 = scmp.eq.s32.totalorder %s35, 3
      %p126 = por %p124, %p125
      %p128 = scmp.ne.s32.totalorder %s113, %s127
      %p129 = scmp.eq.s32.totalorder %s35, 0
      %p130 = por %p128, %p129
      %s132 = sadd.s32 %s131, 1
      %p135 = scmp.eq.s32.totalorder %s29, 3
      %p136 = scmp.ne.s32.totalorder %s131, %s133
      %p137 = scmp.eq.s32.totalorder %s29, 0
      %p138 = por %p136, %p137
      %p139 = scmp.ne.s32.totalorder %s131, %s133
      %p140 = scmp.eq.s32.totalorder %s34, 3
      %p141 = por %p139, %p140
      %p142 = scmp.ne.s32.totalorder %s133, %s134
      %p143 = scmp.eq.s32.totalorder %s34, 0
      %p144 = por %p142, %p143
      %p145 = scmp.ne.s32.totalorder %s133, %s134
      %p146 = scmp.eq.s32.totalorder %s35, 3
      %p147 = por %p145, %p146
      %p149 = scmp.ne.s32.totalorder %s134, %s148
      %p150 = scmp.eq.s32.totalorder %s35, 0
      %p151 = por %p149, %p150
      %s153 = sadd.s32 %s152, 1
      %p156 = scmp.eq.s32.totalorder %s29, 3
      %p157 = scmp.ne.s32.totalorder %s152, %s154
      %p158 = scmp.eq.s32.totalorder %s29, 0
      %p159 = por %p157, %p158
      %p160 = scmp.ne.s32.totalorder %s152, %s154
      %p161 = scmp.eq.s32.totalorder %s34, 3
      %p162 = por %p160, %p161
      %p163 = scmp.ne.s32.totalorder %s154, %s155
      %p164 = scmp.eq.s32.totalorder %s34, 0
      %p165 = por %p163, %p164
      %p166 = scmp.ne.s32.totalorder %s154, %s155
      %p167 = scmp.eq.s32.totalorder %s35, 3
      %p168 = por %p166, %p167
      %p170 = scmp.ne.s32.totalorder %s155, %s169
      %p171 = scmp.eq.s32.totalorder %s35, 0
      %p172 = por %p170, %p171
      %s174 = sadd.s32 %s173, 1
      %p177 = scmp.eq.s32.totalorder %s29, 3
      %p178 = scmp.ne.s32.totalorder %s173, %s175
      %p179 = scmp.eq.s32.totalorder %s29, 0
      %p180 = por %p178, %p179
      %p181 = scmp.ne.s32.totalorder %s173, %s175
      %p182 = scmp.eq.s32.totalorder %s34, 3
      %p183 = por %p181, %p182
      %p184 = scmp.ne.s32.totalorder %s175, %s176
      %p185 = scmp.eq.s32.totalorder %s34, 0
      %p186 = por %p184, %p185
      %p187 = scmp.ne.s32.totalorder %s175, %s176
      %p188 = scmp.eq.s32.totalorder %s35, 3
      %p189 = por %p187, %p188
      %p191 = scmp.ne.s32.totalorder %s176, %s190
      %p192 = scmp.eq.s32.totalorder %s35, 0
      %p193 = por %p191, %p192
      %s195 = sadd.s32 %s194, 1
      %p198 = scmp.eq.s32.totalorder %s29, 3
      %p199 = scmp.ne.s32.totalorder %s194, %s196
      %p200 = scmp.eq.s32.totalorder %s29, 0
      %p201 = por %p199, %p200
      %p202 = scmp.ne.s32.totalorder %s194, %s196
      %p203 = scmp.eq.s32.totalorder %s34, 3
      %p204 = por %p202, %p203
      %p205 = scmp.ne.s32.totalorder %s196, %s197
      %p206 = scmp.eq.s32.totalorder %s34, 0
      %p207 = por %p205, %p206
      %p208 = scmp.ne.s32.totalorder %s196, %s197
      %p209 = scmp.eq.s32.totalorder %s35, 3
      %p210 = por %p208, %p209
      %p212 = scmp.ne.s32.totalorder %s197, %s211
      %p213 = scmp.eq.s32.totalorder %s35, 0
      %p214 = por %p212, %p213
      %s216 = sadd.s32 %s215, 1
      %p219 = scmp.eq.s32.totalorder %s29, 3
      %p220 = scmp.ne.s32.totalorder %s215, %s217
      %p221 = scmp.eq.s32.totalorder %s29, 0
      %p222 = por %p220, %p221
      %p223 = scmp.ne.s32.totalorder %s215, %s217
      %p224 = scmp.eq.s32.totalorder %s34, 3
      %p225 = por %p223, %p224
      %p226 = scmp.ne.s32.totalorder %s217, %s218
      %p227 = scmp.eq.s32.totalorder %s34, 0
      %p228 = por %p226, %p227
      %p229 = scmp.ne.s32.totalorder %s217, %s218
      %p230 = scmp.eq.s32.totalorder %s35, 3
      %p231 = por %p229, %p230
      %p233 = scmp.ne.s32.totalorder %s218, %s232
      %p234 = scmp.eq.s32.totalorder %s35, 0
      %p235 = por %p233, %p234
      %s237 = sadd.s32 %s236, 1
      %p240 = scmp.eq.s32.totalorder %s29, 3
      %p241 = scmp.ne.s32.totalorder %s236, %s238
      %p242 = scmp.eq.s32.totalorder %s29, 0
      %p243 = por %p241, %p242
      %p244 = scmp.ne.s32.totalorder %s236, %s238
      %p245 = scmp.eq.s32.totalorder %s34, 3
      %p246 = por %p244, %p245
      %p247 = scmp.ne.s32.totalorder %s238, %s239
      %p248 = scmp.eq.s32.totalorder %s34, 0
      %p249 = por %p247, %p248
      %p250 = scmp.ne.s32.totalorder %s238, %s239
      %p251 = scmp.eq.s32.totalorder %s35, 3
      %p252 = por %p250, %p251
      %p254 = scmp.ne.s32.totalorder %s239, %s253
      %p255 = scmp.eq.s32.totalorder %s35, 0
      %p256 = por %p254, %p255
      %s258 = sadd.s32 %s257, 1
      %p261 = scmp.eq.s32.totalorder %s29, 3
      %p262 = scmp.ne.s32.totalorder %s257, %s259
      %p263 = scmp.eq.s32.totalorder %s29, 0
      %p264 = por %p262, %p263
      %p265 = scmp.ne.s32.totalorder %s257, %s259
      %p266 = scmp.eq.s32.totalorder %s34, 3
      %p267 = por %p265, %p266
      %p268 = scmp.ne.s32.totalorder %s259, %s260
      %p269 = scmp.eq.s32.totalorder %s34, 0
      %p270 = por %p268, %p269
      %p271 = scmp.ne.s32.totalorder %s259, %s260
      %p272 = scmp.eq.s32.totalorder %s35, 3
      %p273 = por %p271, %p272
      %p275 = scmp.ne.s32.totalorder %s260, %s274
      %p276 = scmp.eq.s32.totalorder %s35, 0
      %p277 = por %p275, %p276
      %s278 = ssub.s32 %s36, %s55
      %s279 = ssub.s32 %s37, %s51
      %s280 = sor.u32 %s278, %s279
      %p281 = scmp.eq.s32.totalorder %s280, 0
      %s283 = sadd.s32 %s282, 1
      %s284 = scalar_select %p281, %s282, %s283
      %p287 = pneg %p281
      %p288 = scmp.eq.s32.totalorder %s29, 3
      %p289 = por %p287, %p288
      %p290 = scmp.ne.s32.totalorder %s282, %s285
      %p291 = scmp.eq.s32.totalorder %s29, 0
      %p292 = por %p290, %p291
      %p293 = scmp.ne.s32.totalorder %s282, %s285
      %p294 = scmp.eq.s32.totalorder %s34, 3
      %p295 = por %p293, %p294
      %p296 = scmp.ne.s32.totalorder %s285, %s286
      %p297 = scmp.eq.s32.totalorder %s34, 0
      %p298 = por %p296, %p297
      %p299 = scmp.ne.s32.totalorder %s285, %s286
      %p300 = scmp.eq.s32.totalorder %s35, 3
      %p301 = por %p299, %p300
      %p303 = scmp.ne.s32.totalorder %s286, %s302
      %p304 = scmp.eq.s32.totalorder %s35, 0
      %p305 = por %p303, %p304
      %p306 = scmp.le.s32.totalorder 1, %s29
      %p307 = scmp.lt.s32.totalorder %s29, 5
      %p308 = pnand %p306, %p307
      %p309 = pneg %p308
      // Predicated region
      $region9: #{tpu_custom_call.1} parent=5 // pred_check
        _
      $region10: #{tpu_custom_call.1} parent=5 // pred_check_branch
        %311 = sbr.rel (%p308) target = $region12
      $region11: #{tpu_custom_call.1} parent=5 // pred_region
        %s312 = ssub.s32 %s29, 1
        // Predicated region
        $region13: #{tpu_custom_call.1} parent=11 // pred_check
          %p313 = pneg %p123
        $region14: #{tpu_custom_call.1} parent=11 // pred_check_branch
          %315 = sbr.rel (%p313) target = $region16
        $region15: #{tpu_custom_call.1} parent=11 // pred_region
          %s317 = ssub.s32 8192, 8192
          %318 = vsyncadd [#allocation9], %s317
          %s319 = sshll.u32 [#allocation10], 4
          %s320 = int_to_ptr.vmem [resolvable:$true] %s319
          %325 = dma.hbm_to_vmem [thread:$0]  %s2, 8192, %s320, [#allocation9], 128, 128, 8
        $region16: #{tpu_custom_call.1} parent=11 // pred_fallthru
          _
        // Predicated region
        $region17: #{tpu_custom_call.1} parent=11 // pred_check
          %p326 = pneg %p144
        $region18: #{tpu_custom_call.1} parent=11 // pred_check_branch
          %328 = sbr.rel (%p326) target = $region20
        $region19: #{tpu_custom_call.1} parent=11 // pred_region
          %s330 = ssub.s32 32, 32
          %331 = vsyncadd [#allocation12], %s330
          %s332 = sshll.u32 [#allocation11], 4
          %s333 = int_to_ptr.vmem [resolvable:$true] %s332
          %338 = dma.hbm_to_vmem [thread:$0]  %s3, 32, %s333, [#allocation12], 16, 16, 1
        $region20: #{tpu_custom_call.1} parent=11 // pred_fallthru
          _
        // Predicated region
        $region21: #{tpu_custom_call.1} parent=11 // pred_check
          %p339 = pneg %p165
        $region22: #{tpu_custom_call.1} parent=11 // pred_check_branch
          %341 = sbr.rel (%p339) target = $region24
        $region23: #{tpu_custom_call.1} parent=11 // pred_region
          %s343 = ssub.s32 4096, 4096
          %344 = vsyncadd [#allocation12], %s343
          %s345 = sshll.u32 [#allocation13], 4
          %s346 = int_to_ptr.vmem [resolvable:$true] %s345
          %351 = dma.hbm_to_vmem [thread:$0]  %s4, 4096, %s346, [#allocation12], 128, 128, 8
        $region24: #{tpu_custom_call.1} parent=11 // pred_fallthru
          _
        // Predicated region
        $region25: #{tpu_custom_call.1} parent=11 // pred_check
          %p352 = pneg %p186
        $region26: #{tpu_custom_call.1} parent=11 // pred_check_branch
          %354 = sbr.rel (%p352) target = $region28
        $region27: #{tpu_custom_call.1} parent=11 // pred_region
          %s356 = ssub.s32 32, 32
          %357 = vsyncadd [#allocation15], %s356
          %s358 = sshll.u32 [#allocation14], 4
          %s359 = int_to_ptr.vmem [resolvable:$true] %s358
          %364 = dma.hbm_to_vmem [thread:$0]  %s5, 32, %s359, [#allocation15], 16, 16, 1
        $region28: #{tpu_custom_call.1} parent=11 // pred_fallthru
          _
        // Predicated region
        $region29: #{tpu_custom_call.1} parent=11 // pred_check
          %p365 = pneg %p207
        $region30: #{tpu_custom_call.1} parent=11 // pred_check_branch
          %367 = sbr.rel (%p365) target = $region32
        $region31: #{tpu_custom_call.1} parent=11 // pred_region
          %s369 = ssub.s32 4096, 4096
          %370 = vsyncadd [#allocation15], %s369
          %s371 = sshll.u32 [#allocation16], 4
          %s372 = int_to_ptr.vmem [resolvable:$true] %s371
          %377 = dma.hbm_to_vmem [thread:$0]  %s6, 4096, %s372, [#allocation15], 128, 128, 8
        $region32: #{tpu_custom_call.1} parent=11 // pred_fallthru
          _
        // Predicated region
        $region33: #{tpu_custom_call.1} parent=11 // pred_check
          %p378 = pneg %p228
        $region34: #{tpu_custom_call.1} parent=11 // pred_check_branch
          %380 = sbr.rel (%p378) target = $region36
        $region35: #{tpu_custom_call.1} parent=11 // pred_region
          %s382 = ssub.s32 32, 32
          %383 = vsyncadd [#allocation18], %s382
          %s384 = sshll.u32 [#allocation17], 4
          %s385 = int_to_ptr.vmem [resolvable:$true] %s384
          %390 = dma.hbm_to_vmem [thread:$0]  %s7, 32, %s385, [#allocation18], 16, 16, 1
        $region36: #{tpu_custom_call.1} parent=11 // pred_fallthru
          _
        // Predicated region
        $region37: #{tpu_custom_call.1} parent=11 // pred_check
          %p391 = pneg %p249
        $region38: #{tpu_custom_call.1} parent=11 // pred_check_branch
          %393 = sbr.rel (%p391) target = $region40
        $region39: #{tpu_custom_call.1} parent=11 // pred_region
          %s395 = ssub.s32 8192, 8192
          %396 = vsyncadd [#allocation18], %s395
          %s397 = sshll.u32 [#allocation19], 4
          %s398 = int_to_ptr.vmem [resolvable:$true] %s397
          %403 = dma.hbm_to_vmem [thread:$0]  %s8, 8192, %s398, [#allocation18], 256, 256, 16
        $region40: #{tpu_custom_call.1} parent=11 // pred_fallthru
          _
        // Predicated region
        $region41: #{tpu_custom_call.1} parent=11 // pred_check
          %p404 = pneg %p270
        $region42: #{tpu_custom_call.1} parent=11 // pred_check_branch
          %406 = sbr.rel (%p404) target = $region44
        $region43: #{tpu_custom_call.1} parent=11 // pred_region
          %s408 = ssub.s32 32, 32
          %409 = vsyncadd [#allocation21], %s408
          %s411 = sshll.u32 [#allocation20], 4
          %s412 = int_to_ptr.vmem [resolvable:$true] %s411
          %414 = dma.hbm_to_vmem [thread:$0]  %s9, 32, %s412, [#allocation21]
        $region44: #{tpu_custom_call.1} parent=11 // pred_fallthru
          _
      $region12: #{tpu_custom_call.1} parent=5 // pred_fallthru
        _
      %p415 = scmp.lt.s32.totalorder %s29, 4
      // Predicated region
      $region45: #{tpu_custom_call.1} parent=5 // pred_check
        %p416 = pneg %p415
      $region46: #{tpu_custom_call.1} parent=5 // pred_check_branch
        %418 = sbr.rel (%p416) target = $region48
      $region47: #{tpu_custom_call.1} parent=5 // pred_region
        // Predicated region
        $region49: #{tpu_custom_call.1} parent=47 // pred_check
          %p419 = pneg %p70
        $region50: #{tpu_custom_call.1} parent=47 // pred_check_branch
          %421 = sbr.rel (%p419) target = $region52
        $region51: #{tpu_custom_call.1} parent=47 // pred_region
          %s422 = sand.u32 %s60, 1
          %s423 = scalar_lea.sflag [#allocation6], %s422
          %s424 = sand.u32 %s60, 1
          %s425 = smul.addr %s424, 256
          %s426 = scalar_lea.vmem [#allocation5], %s425
          %s427 = smul.u32 16, %s37
          %s429 = ssub.s32 4096, 4096
          %430 = vsyncadd %s423, %s429
          %s431 = smul.addr %s427, 2
          %s432 = smul.addr %s36, 32
          %s433 = sadd.s32 %s431, %s432
          %s434 = smul.addr %s433, 128
          %s435 = scalar_lea.hbm %s0, %s434
          %s436 = sshll.u32 %s426, 4
          %s437 = int_to_ptr.vmem [resolvable:$true] %s436
          %442 = dma.hbm_to_vmem [thread:$0]  %s435, 4096, %s437, %s423, 256, 256, 16
        $region52: #{tpu_custom_call.1} parent=47 // pred_fallthru
          _
        // Predicated region
        $region53: #{tpu_custom_call.1} parent=47 // pred_check
          %p443 = pneg %p96
        $region54: #{tpu_custom_call.1} parent=47 // pred_check_branch
          %445 = sbr.rel (%p443) target = $region56
        $region55: #{tpu_custom_call.1} parent=47 // pred_region
          %s446 = sand.u32 %s29, 1
          %s447 = scalar_lea.sflag [#allocation9], %s446
          %s448 = sand.u32 %s86, 1
          %s449 = smul.addr %s448, 128
          %s450 = scalar_lea.vmem [#allocation8], %s449
          %s452 = ssub.s32 2048, 2048
          %453 = vsyncadd %s447, %s452
          %s454 = smul.addr %s36, 16
          %s455 = smul.addr %s454, 128
          %s456 = scalar_lea.hbm %s1, %s455
          %s457 = sshll.u32 %s450, 4
          %s458 = int_to_ptr.vmem [resolvable:$true] %s457
          %463 = dma.hbm_to_vmem [thread:$0]  %s456, 2048, %s458, %s447, 128, 128, 8
        $region56: #{tpu_custom_call.1} parent=47 // pred_fallthru
          _
      $region48: #{tpu_custom_call.1} parent=5 // pred_fallthru
        _
      %p464 = scmp.le.s32.totalorder 1, %s29
      %p465 = scmp.lt.s32.totalorder %s29, 5
      %p466 = pnand %p464, %p465
      %p467 = pneg %p466
      // Predicated region
      $region57: #{tpu_custom_call.1} parent=5 // pred_check
        _
      $region58: #{tpu_custom_call.1} parent=5 // pred_check_branch
        %469 = sbr.rel (%p466) target = $region60
      $region59: #{tpu_custom_call.1} parent=5 // pred_region
        %s470 = ssub.s32 %s29, 1
        %s471 = sand.u32 %s63, 1
        %s472 = scalar_lea.sflag [#allocation6], %s471
        %s473 = sand.u32 %s63, 1
        %s474 = smul.addr %s473, 256
        %s475 = scalar_lea.vmem [#allocation5], %s474
        // Predicated region
        $region61: #{tpu_custom_call.1} parent=59 // pred_check
          %p476 = pneg %p76
        $region62: #{tpu_custom_call.1} parent=59 // pred_check_branch
          %478 = sbr.rel (%p476) target = $region64
        $region63: #{tpu_custom_call.1} parent=59 // pred_region
          %479 = dma.done %s472, 4096
        $region64: #{tpu_custom_call.1} parent=59 // pred_fallthru
          _
        %s480 = sand.u32 %s34, 1
        %s481 = scalar_lea.sflag [#allocation9], %s480
        %s482 = sand.u32 %s89, 1
        %s483 = smul.addr %s482, 128
        %s484 = scalar_lea.vmem [#allocation8], %s483
        // Predicated region
        $region65: #{tpu_custom_call.1} parent=59 // pred_check
          %p485 = pneg %p102
        $region66: #{tpu_custom_call.1} parent=59 // pred_check_branch
          %487 = sbr.rel (%p485) target = $region68
        $region67: #{tpu_custom_call.1} parent=59 // pred_region
          %488 = dma.done %s481, 2048
        $region68: #{tpu_custom_call.1} parent=59 // pred_fallthru
          _
        // Predicated region
        $region69: #{tpu_custom_call.1} parent=59 // pred_check
          %p489 = pneg %p123
        $region70: #{tpu_custom_call.1} parent=59 // pred_check_branch
          %491 = sbr.rel (%p489) target = $region72
        $region71: #{tpu_custom_call.1} parent=59 // pred_region
          %492 = dma.done [#allocation9], 8192
        $region72: #{tpu_custom_call.1} parent=59 // pred_fallthru
          _
        // Predicated region
        $region73: #{tpu_custom_call.1} parent=59 // pred_check
          %p493 = pneg %p144
        $region74: #{tpu_custom_call.1} parent=59 // pred_check_branch
          %495 = sbr.rel (%p493) target = $region76
        $region75: #{tpu_custom_call.1} parent=59 // pred_region
          %496 = dma.done [#allocation12], 32
        $region76: #{tpu_custom_call.1} parent=59 // pred_fallthru
          _
        // Predicated region
        $region77: #{tpu_custom_call.1} parent=59 // pred_check
          %p497 = pneg %p165
        $region78: #{tpu_custom_call.1} parent=59 // pred_check_branch
          %499 = sbr.rel (%p497) target = $region80
        $region79: #{tpu_custom_call.1} parent=59 // pred_region
          %500 = dma.done [#allocation12], 4096
        $region80: #{tpu_custom_call.1} parent=59 // pred_fallthru
          _
        // Predicated region
        $region81: #{tpu_custom_call.1} parent=59 // pred_check
          %p501 = pneg %p186
        $region82: #{tpu_custom_call.1} parent=59 // pred_check_branch
          %503 = sbr.rel (%p501) target = $region84
        $region83: #{tpu_custom_call.1} parent=59 // pred_region
          %504 = dma.done [#allocation15], 32
        $region84: #{tpu_custom_call.1} parent=59 // pred_fallthru
          _
        // Predicated region
        $region85: #{tpu_custom_call.1} parent=59 // pred_check
          %p505 = pneg %p207
        $region86: #{tpu_custom_call.1} parent=59 // pred_check_branch
          %507 = sbr.rel (%p505) target = $region88
        $region87: #{tpu_custom_call.1} parent=59 // pred_region
          %508 = dma.done [#allocation15], 4096
        $region88: #{tpu_custom_call.1} parent=59 // pred_fallthru
          _
        // Predicated region
        $region89: #{tpu_custom_call.1} parent=59 // pred_check
          %p509 = pneg %p228
        $region90: #{tpu_custom_call.1} parent=59 // pred_check_branch
          %511 = sbr.rel (%p509) target = $region92
        $region91: #{tpu_custom_call.1} parent=59 // pred_region
          %512 = dma.done [#allocation18], 32
        $region92: #{tpu_custom_call.1} parent=59 // pred_fallthru
          _
        // Predicated region
        $region93: #{tpu_custom_call.1} parent=59 // pred_check
          %p513 = pneg %p249
        $region94: #{tpu_custom_call.1} parent=59 // pred_check_branch
          %515 = sbr.rel (%p513) target = $region96
        $region95: #{tpu_custom_call.1} parent=59 // pred_region
          %516 = dma.done [#allocation18], 8192
        $region96: #{tpu_custom_call.1} parent=59 // pred_fallthru
          _
        // Predicated region
        $region97: #{tpu_custom_call.1} parent=59 // pred_check
          %p517 = pneg %p270
        $region98: #{tpu_custom_call.1} parent=59 // pred_check_branch
          %519 = sbr.rel (%p517) target = $region100
        $region99: #{tpu_custom_call.1} parent=59 // pred_region
          %520 = dma.done [#allocation21], 32
        $region100: #{tpu_custom_call.1} parent=59 // pred_fallthru
          _
        %s521 = sand.u32 %s63, 1
        %s522 = scalar_lea.sflag [#allocation6], %s521
        %s523 = sand.u32 %s63, 1
        %s524 = smul.addr %s523, 256
        %s525 = scalar_lea.vmem [#allocation5], %s524
        %p526 = pneg %p76
        %p527 = pneg %p73
        %s528 = sand.u32 %s34, 1
        %s529 = scalar_lea.sflag [#allocation9], %s528
        %s530 = sand.u32 %s89, 1
        %s531 = smul.addr %s530, 128
        %s532 = scalar_lea.vmem [#allocation8], %s531
        %p533 = pneg %p102
        %p534 = pneg %p99
        %p535 = pneg %p123
        %p536 = pneg %p120
        %p537 = pneg %p144
        %p538 = pneg %p141
        %p539 = pneg %p165
        %p540 = pneg %p162
        %p541 = pneg %p186
        %p542 = pneg %p183
        %p543 = pneg %p207
        %p544 = pneg %p204
        %p545 = pneg %p228
        %p546 = pneg %p225
        %p547 = pneg %p249
        %p548 = pneg %p246
        %p549 = pneg %p270
        %p550 = pneg %p267
        %p551 = pneg %p298
        %p552 = pneg %p295
        %s553 = sand.u32 %s285, 1
        %s554 = scalar_lea.sflag [#allocation7], %s553
        %s555 = sand.u32 %s285, 1
        %s556 = smul.addr %s555, 256
        %s557 = scalar_lea.vmem [#allocation22], %s556
        %s558 = smul.u32 16, %s40
        %s559 = smul.u32 16, %s40
        %p560 = scmp.eq.s32.totalorder %s40, 0
        // Predicated region
        $region101: #{tpu_custom_call.1} parent=59 // pred_check
          %p561 = pneg %p560
        $region102: #{tpu_custom_call.1} parent=59 // pred_check_branch
          %563 = sbr.rel (%p561) target = $region104
        $region103: #{tpu_custom_call.1} parent=59 // pred_region
          %v564 = vld [vmem:[%s484] sm:$0xff]
          %v565 = vld [vmem:[%s484 + $0x8] sm:$0xff]
          %v566 = vld [vmem:[%s484 + $0x10] sm:$0xff]
          %v567 = vld [vmem:[%s484 + $0x18] sm:$0xff]
          %v568 = vld [vmem:[%s484 + $0x20] sm:$0xff]
          %v569 = vld [vmem:[%s484 + $0x28] sm:$0xff]
          %v570 = vld [vmem:[%s484 + $0x30] sm:$0xff]
          %v571 = vld [vmem:[%s484 + $0x38] sm:$0xff]
          %v572 = vld [vmem:[%s484 + $0x40] sm:$0xff]
          %v573 = vld [vmem:[%s484 + $0x48] sm:$0xff]
          %v574 = vld [vmem:[%s484 + $0x50] sm:$0xff]
          %v575 = vld [vmem:[%s484 + $0x58] sm:$0xff]
          %v576 = vld [vmem:[%s484 + $0x60] sm:$0xff]
          %v577 = vld [vmem:[%s484 + $0x68] sm:$0xff]
          %v578 = vld [vmem:[%s484 + $0x70] sm:$0xff]
          %v579 = vld [vmem:[%s484 + $0x78] sm:$0xff]
          %s580 = smul.u32 %s41, 128
          %s581 = scalar_lea.vmem [#allocation13], %s580
          %v582 = vld [vmem:[%s581] sm:$0xff]
          %v583 = vld [vmem:[%s581 + $0x8] sm:$0xff]
          %v584 = vld [vmem:[%s581 + $0x10] sm:$0xff]
          %v585 = vld [vmem:[%s581 + $0x18] sm:$0xff]
          %v586 = vld [vmem:[%s581 + $0x20] sm:$0xff]
          %v587 = vld [vmem:[%s581 + $0x28] sm:$0xff]
          %v588 = vld [vmem:[%s581 + $0x30] sm:$0xff]
          %v589 = vld [vmem:[%s581 + $0x38] sm:$0xff]
          %v590 = vld [vmem:[%s581 + $0x40] sm:$0xff]
          %v591 = vld [vmem:[%s581 + $0x48] sm:$0xff]
          %v592 = vld [vmem:[%s581 + $0x50] sm:$0xff]
          %v593 = vld [vmem:[%s581 + $0x58] sm:$0xff]
          %v594 = vld [vmem:[%s581 + $0x60] sm:$0xff]
          %v595 = vld [vmem:[%s581 + $0x68] sm:$0xff]
          %v596 = vld [vmem:[%s581 + $0x70] sm:$0xff]
          %v597 = vld [vmem:[%s581 + $0x78] sm:$0xff]
          %s598 = scalar_lea.vmem [#allocation14], %s41
          %v599 = vld [vmem:[%s598] sm:$0x1]
          %v601 = vlaneseq
          %v602 = vshrl.u32 %v601, 7
          %v603 = vsub.s32 0, %v602
          %v604 = vrot.slane %v599, %v603
          %606 = vmatprep.subr.mxu0 0.0
          %607 = vmatpush1.msra.mxu0 %v582
          %608 = vmatprep.subr.mxu0 0.0
          %609 = vmatpush1.msra.mxu0 %v583
          %610 = vmatprep.subr.mxu0 0.0
          %611 = vmatpush1.msra.mxu0 %v584
          %612 = vmatprep.subr.mxu0 0.0
          %613 = vmatpush1.msra.mxu0 %v585
          %614 = vmatprep.subr.mxu0 0.0
          %615 = vmatpush1.msra.mxu0 %v586
          %616 = vmatprep.subr.mxu0 0.0
          %617 = vmatpush1.msra.mxu0 %v587
          %618 = vmatprep.subr.mxu0 0.0
          %619 = vmatpush1.msra.mxu0 %v588
          %620 = vmatprep.subr.mxu0 0.0
          %621 = vmatpush1.msra.mxu0 %v589
          %622 = vmatprep.subr.mxu0 0.0
          %623 = vmatpush1.msra.mxu0 %v590
          %624 = vmatprep.subr.mxu0 0.0
          %625 = vmatpush1.msra.mxu0 %v591
          %626 = vmatprep.subr.mxu0 0.0
          %627 = vmatpush1.msra.mxu0 %v592
          %628 = vmatprep.subr.mxu0 0.0
          %629 = vmatpush1.msra.mxu0 %v593
          %630 = vmatprep.subr.mxu0 0.0
          %631 = vmatpush1.msra.mxu0 %v594
          %632 = vmatprep.subr.mxu0 0.0
          %633 = vmatpush1.msra.mxu0 %v595
          %634 = vmatprep.subr.mxu0 0.0
          %635 = vmatpush1.msra.mxu0 %v596
          %636 = vmatprep.subr.mxu0 0.0
          %637 = vmatpush1.msra.mxu0 %v597
          %638 = vmatprep.subr.mxu0 0.0
          %639 = vmatpush1.msra.mxu0 0.0
          %640 = vmatprep.subr.mxu0 0.0
          %641 = vmatpush1.msra.mxu0 0.0
          %642 = vmatprep.subr.mxu0 0.0
          %643 = vmatpush1.msra.mxu0 0.0
          %644 = vmatprep.subr.mxu0 0.0
          %645 = vmatpush1.msra.mxu0 0.0
          %646 = vmatprep.subr.mxu0 0.0
          %647 = vmatpush1.msra.mxu0 0.0
          %648 = vmatprep.subr.mxu0 0.0
          %649 = vmatpush1.msra.mxu0 0.0
          %650 = vmatprep.subr.mxu0 0.0
          %651 = vmatpush1.msra.mxu0 0.0
          %652 = vmatprep.subr.mxu0 0.0
          %653 = vmatpush1.msra.mxu0 0.0
          %654 = vmatprep.subr.mxu0 0.0
          %655 = vmatpush1.msra.mxu0 0.0
          %656 = vmatprep.subr.mxu0 0.0
          %657 = vmatpush1.msra.mxu0 0.0
          %658 = vmatprep.subr.mxu0 0.0
          %659 = vmatpush1.msra.mxu0 0.0
          %660 = vmatprep.subr.mxu0 0.0
          %661 = vmatpush1.msra.mxu0 0.0
          %662 = vmatprep.subr.mxu0 0.0
          %663 = vmatpush1.msra.mxu0 0.0
          %664 = vmatprep.subr.mxu0 0.0
          %665 = vmatpush1.msra.mxu0 0.0
          %666 = vmatprep.subr.mxu0 0.0
          %667 = vmatpush1.msra.mxu0 0.0
          %668 = vmatprep.subr.mxu0 0.0
          %669 = vmatpush1.msra.mxu0 0.0
          %670 = vmatprep.mubr.f32.mxu0 0.0
          %671 = vmatmul.mubr.f32.gmra.mrb[0].mxu0 %v564
          %v672 = vpop.f32.mrb[0].mxu0
          %v673 = vadd.f32 %v604, %v672
          %v674 = vpop.f32.mrb[0].mxu0
          %675 = vmatprep.mubr.f32.mxu0 0.0
          %676 = vmatmul.mubr.f32.gmra.mrb[0].mxu0 %v565
          %v677 = vpop.f32.mrb[0].mxu0
          %v678 = vadd.f32 %v604, %v677
          %v679 = vpop.f32.mrb[0].mxu0
          %680 = vmatprep.mubr.f32.mxu0 0.0
          %681 = vmatmul.mubr.f32.gmra.mrb[0].mxu0 %v566
          %v682 = vpop.f32.mrb[0].mxu0
          %v683 = vadd.f32 %v604, %v682
          %v684 = vpop.f32.mrb[0].mxu0
          %685 = vmatprep.mubr.f32.mxu0 0.0
          %686 = vmatmul.mubr.f32.gmra.mrb[0].mxu0 %v567
          %v687 = vpop.f32.mrb[0].mxu0
          %v688 = vadd.f32 %v604, %v687
          %v689 = vpop.f32.mrb[0].mxu0
          %690 = vmatprep.mubr.f32.mxu0 0.0
          %691 = vmatmul.mubr.f32.gmra.mrb[0].mxu0 %v568
          %v692 = vpop.f32.mrb[0].mxu0
          %v693 = vadd.f32 %v604, %v692
          %v694 = vpop.f32.mrb[0].mxu0
          %695 = vmatprep.mubr.f32.mxu0 0.0
          %696 = vmatmul.mubr.f32.gmra.mrb[0].mxu0 %v569
          %v697 = vpop.f32.mrb[0].mxu0
          %v698 = vadd.f32 %v604, %v697
          %v699 = vpop.f32.mrb[0].mxu0
          %700 = vmatprep.mubr.f32.mxu0 0.0
          %701 = vmatmul.mubr.f32.gmra.mrb[0].mxu0 %v570
          %v702 = vpop.f32.mrb[0].mxu0
          %v703 = vadd.f32 %v604, %v702
          %v704 = vpop.f32.mrb[0].mxu0
          %705 = vmatprep.mubr.f32.mxu0 0.0
          %706 = vmatmul.mubr.f32.gmra.mrb[0].mxu0 %v571
          %v707 = vpop.f32.mrb[0].mxu0
          %v708 = vadd.f32 %v604, %v707
          %v709 = vpop.f32.mrb[0].mxu0
          %710 = vmatprep.mubr.f32.mxu0 0.0
          %711 = vmatmul.mubr.f32.gmra.mrb[0].mxu0 %v572
          %v712 = vpop.f32.mrb[0].mxu0
          %v713 = vadd.f32 %v604, %v712
          %v714 = vpop.f32.mrb[0].mxu0
          %715 = vmatprep.mubr.f32.mxu0 0.0
          %716 = vmatmul.mubr.f32.gmra.mrb[0].mxu0 %v573
          %v717 = vpop.f32.mrb[0].mxu0
          %v718 = vadd.f32 %v604, %v717
          %v719 = vpop.f32.mrb[0].mxu0
          %720 = vmatprep.mubr.f32.mxu0 0.0
          %721 = vmatmul.mubr.f32.gmra.mrb[0].mxu0 %v574
          %v722 = vpop.f32.mrb[0].mxu0
          %v723 = vadd.f32 %v604, %v722
          %v724 = vpop.f32.mrb[0].mxu0
          %725 = vmatprep.mubr.f32.mxu0 0.0
          %726 = vmatmul.mubr.f32.gmra.mrb[0].mxu0 %v575
          %v727 = vpop.f32.mrb[0].mxu0
          %v728 = vadd.f32 %v604, %v727
          %v729 = vpop.f32.mrb[0].mxu0
          %730 = vmatprep.mubr.f32.mxu0 0.0
          %731 = vmatmul.mubr.f32.gmra.mrb[0].mxu0 %v576
          %v732 = vpop.f32.mrb[0].mxu0
          %v733 = vadd.f32 %v604, %v732
          %v734 = vpop.f32.mrb[0].mxu0
          %735 = vmatprep.mubr.f32.mxu0 0.0
          %736 = vmatmul.mubr.f32.gmra.mrb[0].mxu0 %v577
          %v737 = vpop.f32.mrb[0].mxu0
          %v738 = vadd.f32 %v604, %v737
          %v739 = vpop.f32.mrb[0].mxu0
          %740 = vmatprep.mubr.f32.mxu0 0.0
          %741 = vmatmul.mubr.f32.gmra.mrb[0].mxu0 %v578
          %v742 = vpop.f32.mrb[0].mxu0
          %v743 = vadd.f32 %v604, %v742
          %v744 = vpop.f32.mrb[0].mxu0
          %745 = vmatprep.mubr.f32.mxu0 0.0
          %746 = vmatmul.mubr.f32.gmra.mrb[0].mxu0 %v579
          %v747 = vpop.f32.mrb[0].mxu0
          %v748 = vadd.f32 %v604, %v747
          %v749 = vpop.f32.mrb[0].mxu0
          %750 = vdwg.mxu0
          %s751 = scalar_lea.vmem [#allocation2], %s580
          %752 = vst [vmem:[%s751] sm:$0xff] %v673
          %753 = vst [vmem:[%s751 + $0x8] sm:$0xff] %v678
          %754 = vst [vmem:[%s751 + $0x10] sm:$0xff] %v683
          %755 = vst [vmem:[%s751 + $0x18] sm:$0xff] %v688
          %756 = vst [vmem:[%s751 + $0x20] sm:$0xff] %v693
          %757 = vst [vmem:[%s751 + $0x28] sm:$0xff] %v698
          %758 = vst [vmem:[%s751 + $0x30] sm:$0xff] %v703
          %759 = vst [vmem:[%s751 + $0x38] sm:$0xff] %v708
          %760 = vst [vmem:[%s751 + $0x40] sm:$0xff] %v713
          %761 = vst [vmem:[%s751 + $0x48] sm:$0xff] %v718
          %762 = vst [vmem:[%s751 + $0x50] sm:$0xff] %v723
          %763 = vst [vmem:[%s751 + $0x58] sm:$0xff] %v728
          %764 = vst [vmem:[%s751 + $0x60] sm:$0xff] %v733
          %765 = vst [vmem:[%s751 + $0x68] sm:$0xff] %v738
          %766 = vst [vmem:[%s751 + $0x70] sm:$0xff] %v743
          %767 = vst [vmem:[%s751 + $0x78] sm:$0xff] %v748
          %s768 = scalar_lea.vmem [#allocation16], %s580
          %v769 = vld [vmem:[%s768] sm:$0xff]
          %v770 = vld [vmem:[%s768 + $0x8] sm:$0xff]
          %v771 = vld [vmem:[%s768 + $0x10] sm:$0xff]
          %v772 = vld [vmem:[%s768 + $0x18] sm:$0xff]
          %v773 = vld [vmem:[%s768 + $0x20] sm:$0xff]
          %v774 = vld [vmem:[%s768 + $0x28] sm:$0xff]
          %v775 = vld [vmem:[%s768 + $0x30] sm:$0xff]
          %v776 = vld [vmem:[%s768 + $0x38] sm:$0xff]
          %v777 = vld [vmem:[%s768 + $0x40] sm:$0xff]
          %v778 = vld [vmem:[%s768 + $0x48] sm:$0xff]
          %v779 = vld [vmem:[%s768 + $0x50] sm:$0xff]
          %v780 = vld [vmem:[%s768 + $0x58] sm:$0xff]
          %v781 = vld [vmem:[%s768 + $0x60] sm:$0xff]
          %v782 = vld [vmem:[%s768 + $0x68] sm:$0xff]
          %v783 = vld [vmem:[%s768 + $0x70] sm:$0xff]
          %v784 = vld [vmem:[%s768 + $0x78] sm:$0xff]
          %s785 = scalar_lea.vmem [#allocation17], %s41
          %v786 = vld [vmem:[%s785] sm:$0x1]
          %v788 = vlaneseq
          %v789 = vshrl.u32 %v788, 7
          %v790 = vsub.s32 0, %v789
          %v791 = vrot.slane %v786, %v790
          %793 = vmatprep.subr.mxu0 0.0
          %794 = vmatpush1.msra.mxu0 %v769
          %795 = vmatprep.subr.mxu0 0.0
          %796 = vmatpush1.msra.mxu0 %v770
          %797 = vmatprep.subr.mxu0 0.0
          %798 = vmatpush1.msra.mxu0 %v771
          %799 = vmatprep.subr.mxu0 0.0
          %800 = vmatpush1.msra.mxu0 %v772
          %801 = vmatprep.subr.mxu0 0.0
          %802 = vmatpush1.msra.mxu0 %v773
          %803 = vmatprep.subr.mxu0 0.0
          %804 = vmatpush1.msra.mxu0 %v774
          %805 = vmatprep.subr.mxu0 0.0
          %806 = vmatpush1.msra.mxu0 %v775
          %807 = vmatprep.subr.mxu0 0.0
          %808 = vmatpush1.msra.mxu0 %v776
          %809 = vmatprep.subr.mxu0 0.0
          %810 = vmatpush1.msra.mxu0 %v777
          %811 = vmatprep.subr.mxu0 0.0
          %812 = vmatpush1.msra.mxu0 %v778
          %813 = vmatprep.subr.mxu0 0.0
          %814 = vmatpush1.msra.mxu0 %v779
          %815 = vmatprep.subr.mxu0 0.0
          %816 = vmatpush1.msra.mxu0 %v780
          %817 = vmatprep.subr.mxu0 0.0
          %818 = vmatpush1.msra.mxu0 %v781
          %819 = vmatprep.subr.mxu0 0.0
          %820 = vmatpush1.msra.mxu0 %v782
          %821 = vmatprep.subr.mxu0 0.0
          %822 = vmatpush1.msra.mxu0 %v783
          %823 = vmatprep.subr.mxu0 0.0
          %824 = vmatpush1.msra.mxu0 %v784
          %825 = vmatprep.subr.mxu0 0.0
          %826 = vmatpush1.msra.mxu0 0.0
          %827 = vmatprep.subr.mxu0 0.0
          %828 = vmatpush1.msra.mxu0 0.0
          %829 = vmatprep.subr.mxu0 0.0
          %830 = vmatpush1.msra.mxu0 0.0
          %831 = vmatprep.subr.mxu0 0.0
          %832 = vmatpush1.msra.mxu0 0.0
          %833 = vmatprep.subr.mxu0 0.0
          %834 = vmatpush1.msra.mxu0 0.0
          %835 = vmatprep.subr.mxu0 0.0
          %836 = vmatpush1.msra.mxu0 0.0
          %837 = vmatprep.subr.mxu0 0.0
          %838 = vmatpush1.msra.mxu0 0.0
          %839 = vmatprep.subr.mxu0 0.0
          %840 = vmatpush1.msra.mxu0 0.0
          %841 = vmatprep.subr.mxu0 0.0
          %842 = vmatpush1.msra.mxu0 0.0
          %843 = vmatprep.subr.mxu0 0.0
          %844 = vmatpush1.msra.mxu0 0.0
          %845 = vmatprep.subr.mxu0 0.0
          %846 = vmatpush1.msra.mxu0 0.0
          %847 = vmatprep.subr.mxu0 0.0
          %848 = vmatpush1.msra.mxu0 0.0
          %849 = vmatprep.subr.mxu0 0.0
          %850 = vmatpush1.msra.mxu0 0.0
          %851 = vmatprep.subr.mxu0 0.0
          %852 = vmatpush1.msra.mxu0 0.0
          %853 = vmatprep.subr.mxu0 0.0
          %854 = vmatpush1.msra.mxu0 0.0
          %855 = vmatprep.subr.mxu0 0.0
          %856 = vmatpush1.msra.mxu0 0.0
          %857 = vmatprep.mubr.f32.mxu0 0.0
          %858 = vmatmul.mubr.f32.gmra.mrb[0].mxu0 %v564
          %v859 = vpop.f32.mrb[0].mxu0
          %v860 = vadd.f32 %v791, %v859
          %v861 = vpop.f32.mrb[0].mxu0
          %862 = vmatprep.mubr.f32.mxu0 0.0
          %863 = vmatmul.mubr.f32.gmra.mrb[0].mxu0 %v565
          %v864 = vpop.f32.mrb[0].mxu0
          %v865 = vadd.f32 %v791, %v864
          %v866 = vpop.f32.mrb[0].mxu0
          %867 = vmatprep.mubr.f32.mxu0 0.0
          %868 = vmatmul.mubr.f32.gmra.mrb[0].mxu0 %v566
          %v869 = vpop.f32.mrb[0].mxu0
          %v870 = vadd.f32 %v791, %v869
          %v871 = vpop.f32.mrb[0].mxu0
          %872 = vmatprep.mubr.f32.mxu0 0.0
          %873 = vmatmul.mubr.f32.gmra.mrb[0].mxu0 %v567
          %v874 = vpop.f32.mrb[0].mxu0
          %v875 = vadd.f32 %v791, %v874
          %v876 = vpop.f32.mrb[0].mxu0
          %877 = vmatprep.mubr.f32.mxu0 0.0
          %878 = vmatmul.mubr.f32.gmra.mrb[0].mxu0 %v568
          %v879 = vpop.f32.mrb[0].mxu0
          %v880 = vadd.f32 %v791, %v879
          %v881 = vpop.f32.mrb[0].mxu0
          %882 = vmatprep.mubr.f32.mxu0 0.0
          %883 = vmatmul.mubr.f32.gmra.mrb[0].mxu0 %v569
          %v884 = vpop.f32.mrb[0].mxu0
          %v885 = vadd.f32 %v791, %v884
          %v886 = vpop.f32.mrb[0].mxu0
          %887 = vmatprep.mubr.f32.mxu0 0.0
          %888 = vmatmul.mubr.f32.gmra.mrb[0].mxu0 %v570
          %v889 = vpop.f32.mrb[0].mxu0
          %v890 = vadd.f32 %v791, %v889
          %v891 = vpop.f32.mrb[0].mxu0
          %892 = vmatprep.mubr.f32.mxu0 0.0
          %893 = vmatmul.mubr.f32.gmra.mrb[0].mxu0 %v571
          %v894 = vpop.f32.mrb[0].mxu0
          %v895 = vadd.f32 %v791, %v894
          %v896 = vpop.f32.mrb[0].mxu0
          %897 = vmatprep.mubr.f32.mxu0 0.0
          %898 = vmatmul.mubr.f32.gmra.mrb[0].mxu0 %v572
          %v899 = vpop.f32.mrb[0].mxu0
          %v900 = vadd.f32 %v791, %v899
          %v901 = vpop.f32.mrb[0].mxu0
          %902 = vmatprep.mubr.f32.mxu0 0.0
          %903 = vmatmul.mubr.f32.gmra.mrb[0].mxu0 %v573
          %v904 = vpop.f32.mrb[0].mxu0
          %v905 = vadd.f32 %v791, %v904
          %v906 = vpop.f32.mrb[0].mxu0
          %907 = vmatprep.mubr.f32.mxu0 0.0
          %908 = vmatmul.mubr.f32.gmra.mrb[0].mxu0 %v574
          %v909 = vpop.f32.mrb[0].mxu0
          %v910 = vadd.f32 %v791, %v909
          %v911 = vpop.f32.mrb[0].mxu0
          %912 = vmatprep.mubr.f32.mxu0 0.0
          %913 = vmatmul.mubr.f32.gmra.mrb[0].mxu0 %v575
          %v914 = vpop.f32.mrb[0].mxu0
          %v915 = vadd.f32 %v791, %v914
          %v916 = vpop.f32.mrb[0].mxu0
          %917 = vmatprep.mubr.f32.mxu0 0.0
          %918 = vmatmul.mubr.f32.gmra.mrb[0].mxu0 %v576
          %v919 = vpop.f32.mrb[0].mxu0
          %v920 = vadd.f32 %v791, %v919
          %v921 = vpop.f32.mrb[0].mxu0
          %922 = vmatprep.mubr.f32.mxu0 0.0
          %923 = vmatmul.mubr.f32.gmra.mrb[0].mxu0 %v577
          %v924 = vpop.f32.mrb[0].mxu0
          %v925 = vadd.f32 %v791, %v924
          %v926 = vpop.f32.mrb[0].mxu0
          %927 = vmatprep.mubr.f32.mxu0 0.0
          %928 = vmatmul.mubr.f32.gmra.mrb[0].mxu0 %v578
          %v929 = vpop.f32.mrb[0].mxu0
          %v930 = vadd.f32 %v791, %v929
          %v931 = vpop.f32.mrb[0].mxu0
          %932 = vmatprep.mubr.f32.mxu0 0.0
          %933 = vmatmul.mubr.f32.gmra.mrb[0].mxu0 %v579
          %v934 = vpop.f32.mrb[0].mxu0
          %v935 = vadd.f32 %v791, %v934
          %v936 = vpop.f32.mrb[0].mxu0
          %937 = vdwg.mxu0
          %s938 = scalar_lea.vmem [#allocation3], %s580
          %939 = vst [vmem:[%s938] sm:$0xff] %v860
          %940 = vst [vmem:[%s938 + $0x8] sm:$0xff] %v865
          %941 = vst [vmem:[%s938 + $0x10] sm:$0xff] %v870
          %942 = vst [vmem:[%s938 + $0x18] sm:$0xff] %v875
          %943 = vst [vmem:[%s938 + $0x20] sm:$0xff] %v880
          %944 = vst [vmem:[%s938 + $0x28] sm:$0xff] %v885
          %945 = vst [vmem:[%s938 + $0x30] sm:$0xff] %v890
          %946 = vst [vmem:[%s938 + $0x38] sm:$0xff] %v895
          %947 = vst [vmem:[%s938 + $0x40] sm:$0xff] %v900
          %948 = vst [vmem:[%s938 + $0x48] sm:$0xff] %v905
          %949 = vst [vmem:[%s938 + $0x50] sm:$0xff] %v910
          %950 = vst [vmem:[%s938 + $0x58] sm:$0xff] %v915
          %951 = vst [vmem:[%s938 + $0x60] sm:$0xff] %v920
          %952 = vst [vmem:[%s938 + $0x68] sm:$0xff] %v925
          %953 = vst [vmem:[%s938 + $0x70] sm:$0xff] %v930
          %954 = vst [vmem:[%s938 + $0x78] sm:$0xff] %v935
        $region104: #{tpu_custom_call.1} parent=59 // pred_fallthru
          _
        %p955 = scmp.eq.s32.totalorder %s41, 0
        // Predicated region
        $region105: #{tpu_custom_call.1} parent=59 // pred_check
          %p956 = pneg %p955
        $region106: #{tpu_custom_call.1} parent=59 // pred_check_branch
          %958 = sbr.rel (%p956) target = $region108
        $region107: #{tpu_custom_call.1} parent=59 // pred_region
          %959 = vst [vmem:[#allocation4] sm:$0xff] 0.0
          %960 = vst [vmem:[#allocation4 + $0x8] sm:$0xff] 0.0
          %961 = vst [vmem:[#allocation4 + $0x10] sm:$0xff] 0.0
          %962 = vst [vmem:[#allocation4 + $0x18] sm:$0xff] 0.0
          %963 = vst [vmem:[#allocation4 + $0x20] sm:$0xff] 0.0
          %964 = vst [vmem:[#allocation4 + $0x28] sm:$0xff] 0.0
          %965 = vst [vmem:[#allocation4 + $0x30] sm:$0xff] 0.0
          %966 = vst [vmem:[#allocation4 + $0x38] sm:$0xff] 0.0
          %967 = vst [vmem:[#allocation4 + $0x40] sm:$0xff] 0.0
          %968 = vst [vmem:[#allocation4 + $0x48] sm:$0xff] 0.0
          %969 = vst [vmem:[#allocation4 + $0x50] sm:$0xff] 0.0
          %970 = vst [vmem:[#allocation4 + $0x58] sm:$0xff] 0.0
          %971 = vst [vmem:[#allocation4 + $0x60] sm:$0xff] 0.0
          %972 = vst [vmem:[#allocation4 + $0x68] sm:$0xff] 0.0
          %973 = vst [vmem:[#allocation4 + $0x70] sm:$0xff] 0.0
          %974 = vst [vmem:[#allocation4 + $0x78] sm:$0xff] 0.0
          %975 = vst [vmem:[#allocation4 + $0x80] sm:$0xff] 0.0
          %976 = vst [vmem:[#allocation4 + $0x88] sm:$0xff] 0.0
          %977 = vst [vmem:[#allocation4 + $0x90] sm:$0xff] 0.0
          %978 = vst [vmem:[#allocation4 + $0x98] sm:$0xff] 0.0
          %979 = vst [vmem:[#allocation4 + $0xa0] sm:$0xff] 0.0
          %980 = vst [vmem:[#allocation4 + $0xa8] sm:$0xff] 0.0
          %981 = vst [vmem:[#allocation4 + $0xb0] sm:$0xff] 0.0
          %982 = vst [vmem:[#allocation4 + $0xb8] sm:$0xff] 0.0
          %983 = vst [vmem:[#allocation4 + $0xc0] sm:$0xff] 0.0
          %984 = vst [vmem:[#allocation4 + $0xc8] sm:$0xff] 0.0
          %985 = vst [vmem:[#allocation4 + $0xd0] sm:$0xff] 0.0
          %986 = vst [vmem:[#allocation4 + $0xd8] sm:$0xff] 0.0
          %987 = vst [vmem:[#allocation4 + $0xe0] sm:$0xff] 0.0
          %988 = vst [vmem:[#allocation4 + $0xe8] sm:$0xff] 0.0
          %989 = vst [vmem:[#allocation4 + $0xf0] sm:$0xff] 0.0
          %990 = vst [vmem:[#allocation4 + $0xf8] sm:$0xff] 0.0
        $region108: #{tpu_custom_call.1} parent=59 // pred_fallthru
          _
        %v991 = vld [vmem:[%s475] sm:$0xff]
        %v992 = vld [vmem:[%s475 + $0x8] sm:$0xff]
        %v993 = vld [vmem:[%s475 + $0x10] sm:$0xff]
        %v994 = vld [vmem:[%s475 + $0x18] sm:$0xff]
        %v995 = vld [vmem:[%s475 + $0x20] sm:$0xff]
        %v996 = vld [vmem:[%s475 + $0x28] sm:$0xff]
        %v997 = vld [vmem:[%s475 + $0x30] sm:$0xff]
        %v998 = vld [vmem:[%s475 + $0x38] sm:$0xff]
        %v999 = vld [vmem:[%s475 + $0x40] sm:$0xff]
        %v1000 = vld [vmem:[%s475 + $0x48] sm:$0xff]
        %v1001 = vld [vmem:[%s475 + $0x50] sm:$0xff]
        %v1002 = vld [vmem:[%s475 + $0x58] sm:$0xff]
        %v1003 = vld [vmem:[%s475 + $0x60] sm:$0xff]
        %v1004 = vld [vmem:[%s475 + $0x68] sm:$0xff]
        %v1005 = vld [vmem:[%s475 + $0x70] sm:$0xff]
        %v1006 = vld [vmem:[%s475 + $0x78] sm:$0xff]
        %v1007 = vld [vmem:[%s475 + $0x80] sm:$0xff]
        %v1008 = vld [vmem:[%s475 + $0x88] sm:$0xff]
        %v1009 = vld [vmem:[%s475 + $0x90] sm:$0xff]
        %v1010 = vld [vmem:[%s475 + $0x98] sm:$0xff]
        %v1011 = vld [vmem:[%s475 + $0xa0] sm:$0xff]
        %v1012 = vld [vmem:[%s475 + $0xa8] sm:$0xff]
        %v1013 = vld [vmem:[%s475 + $0xb0] sm:$0xff]
        %v1014 = vld [vmem:[%s475 + $0xb8] sm:$0xff]
        %v1015 = vld [vmem:[%s475 + $0xc0] sm:$0xff]
        %v1016 = vld [vmem:[%s475 + $0xc8] sm:$0xff]
        %v1017 = vld [vmem:[%s475 + $0xd0] sm:$0xff]
        %v1018 = vld [vmem:[%s475 + $0xd8] sm:$0xff]
        %v1019 = vld [vmem:[%s475 + $0xe0] sm:$0xff]
        %v1020 = vld [vmem:[%s475 + $0xe8] sm:$0xff]
        %v1021 = vld [vmem:[%s475 + $0xf0] sm:$0xff]
        %v1022 = vld [vmem:[%s475 + $0xf8] sm:$0xff]
        %s1023 = smul.u32 %s41, 256
        %s1024 = scalar_lea.vmem [#allocation10], %s1023
        %v1025 = vld [vmem:[%s1024] sm:$0xff]
        %v1026 = vld [vmem:[%s1024 + $0x8] sm:$0xff]
        %v1027 = vld [vmem:[%s1024 + $0x10] sm:$0xff]
        %v1028 = vld [vmem:[%s1024 + $0x18] sm:$0xff]
        %v1029 = vld [vmem:[%s1024 + $0x20] sm:$0xff]
        %v1030 = vld [vmem:[%s1024 + $0x28] sm:$0xff]
        %v1031 = vld [vmem:[%s1024 + $0x30] sm:$0xff]
        %v1032 = vld [vmem:[%s1024 + $0x38] sm:$0xff]
        %v1033 = vld [vmem:[%s1024 + $0x40] sm:$0xff]
        %v1034 = vld [vmem:[%s1024 + $0x48] sm:$0xff]
        %v1035 = vld [vmem:[%s1024 + $0x50] sm:$0xff]
        %v1036 = vld [vmem:[%s1024 + $0x58] sm:$0xff]
        %v1037 = vld [vmem:[%s1024 + $0x60] sm:$0xff]
        %v1038 = vld [vmem:[%s1024 + $0x68] sm:$0xff]
        %v1039 = vld [vmem:[%s1024 + $0x70] sm:$0xff]
        %v1040 = vld [vmem:[%s1024 + $0x78] sm:$0xff]
        %v1041 = vld [vmem:[%s1024 + $0x80] sm:$0xff]
        %v1042 = vld [vmem:[%s1024 + $0x88] sm:$0xff]
        %v1043 = vld [vmem:[%s1024 + $0x90] sm:$0xff]
        %v1044 = vld [vmem:[%s1024 + $0x98] sm:$0xff]
        %v1045 = vld [vmem:[%s1024 + $0xa0] sm:$0xff]
        %v1046 = vld [vmem:[%s1024 + $0xa8] sm:$0xff]
        %v1047 = vld [vmem:[%s1024 + $0xb0] sm:$0xff]
        %v1048 = vld [vmem:[%s1024 + $0xb8] sm:$0xff]
        %v1049 = vld [vmem:[%s1024 + $0xc0] sm:$0xff]
        %v1050 = vld [vmem:[%s1024 + $0xc8] sm:$0xff]
        %v1051 = vld [vmem:[%s1024 + $0xd0] sm:$0xff]
        %v1052 = vld [vmem:[%s1024 + $0xd8] sm:$0xff]
        %v1053 = vld [vmem:[%s1024 + $0xe0] sm:$0xff]
        %v1054 = vld [vmem:[%s1024 + $0xe8] sm:$0xff]
        %v1055 = vld [vmem:[%s1024 + $0xf0] sm:$0xff]
        %v1056 = vld [vmem:[%s1024 + $0xf8] sm:$0xff]
        %s1057 = scalar_lea.vmem [#allocation11], %s41
        %v1058 = vld [vmem:[%s1057] sm:$0x1]
        %v1060 = vlaneseq
        %v1061 = vshrl.u32 %v1060, 7
        %v1062 = vsub.s32 0, %v1061
        %v1063 = vrot.slane %v1058, %v1062
        %1065 = vmatprep.subr.mxu0 0.0
        %1066 = vmatpush1.msra.mxu0 %v1025
        %1067 = vmatprep.subr.mxu0 0.0
        %1068 = vmatpush1.msra.mxu0 %v1026
        %1069 = vmatprep.subr.mxu0 0.0
        %1070 = vmatpush1.msra.mxu0 %v1027
        %1071 = vmatprep.subr.mxu0 0.0
        %1072 = vmatpush1.msra.mxu0 %v1028
        %1073 = vmatprep.subr.mxu0 0.0
        %1074 = vmatpush1.msra.mxu0 %v1029
        %1075 = vmatprep.subr.mxu0 0.0
        %1076 = vmatpush1.msra.mxu0 %v1030
        %1077 = vmatprep.subr.mxu0 0.0
        %1078 = vmatpush1.msra.mxu0 %v1031
        %1079 = vmatprep.subr.mxu0 0.0
        %1080 = vmatpush1.msra.mxu0 %v1032
        %1081 = vmatprep.subr.mxu0 0.0
        %1082 = vmatpush1.msra.mxu0 %v1033
        %1083 = vmatprep.subr.mxu0 0.0
        %1084 = vmatpush1.msra.mxu0 %v1034
        %1085 = vmatprep.subr.mxu0 0.0
        %1086 = vmatpush1.msra.mxu0 %v1035
        %1087 = vmatprep.subr.mxu0 0.0
        %1088 = vmatpush1.msra.mxu0 %v1036
        %1089 = vmatprep.subr.mxu0 0.0
        %1090 = vmatpush1.msra.mxu0 %v1037
        %1091 = vmatprep.subr.mxu0 0.0
        %1092 = vmatpush1.msra.mxu0 %v1038
        %1093 = vmatprep.subr.mxu0 0.0
        %1094 = vmatpush1.msra.mxu0 %v1039
        %1095 = vmatprep.subr.mxu0 0.0
        %1096 = vmatpush1.msra.mxu0 %v1040
        %1097 = vmatprep.subr.mxu0 0.0
        %1098 = vmatpush1.msra.mxu0 %v1041
        %1099 = vmatprep.subr.mxu0 0.0
        %1100 = vmatpush1.msra.mxu0 %v1042
        %1101 = vmatprep.subr.mxu0 0.0
        %1102 = vmatpush1.msra.mxu0 %v1043
        %1103 = vmatprep.subr.mxu0 0.0
        %1104 = vmatpush1.msra.mxu0 %v1044
        %1105 = vmatprep.subr.mxu0 0.0
        %1106 = vmatpush1.msra.mxu0 %v1045
        %1107 = vmatprep.subr.mxu0 0.0
        %1108 = vmatpush1.msra.mxu0 %v1046
        %1109 = vmatprep.subr.mxu0 0.0
        %1110 = vmatpush1.msra.mxu0 %v1047
        %1111 = vmatprep.subr.mxu0 0.0
        %1112 = vmatpush1.msra.mxu0 %v1048
        %1113 = vmatprep.subr.mxu0 0.0
        %1114 = vmatpush1.msra.mxu0 %v1049
        %1115 = vmatprep.subr.mxu0 0.0
        %1116 = vmatpush1.msra.mxu0 %v1050
        %1117 = vmatprep.subr.mxu0 0.0
        %1118 = vmatpush1.msra.mxu0 %v1051
        %1119 = vmatprep.subr.mxu0 0.0
        %1120 = vmatpush1.msra.mxu0 %v1052
        %1121 = vmatprep.subr.mxu0 0.0
        %1122 = vmatpush1.msra.mxu0 %v1053
        %1123 = vmatprep.subr.mxu0 0.0
        %1124 = vmatpush1.msra.mxu0 %v1054
        %1125 = vmatprep.subr.mxu0 0.0
        %1126 = vmatpush1.msra.mxu0 %v1055
        %1127 = vmatprep.subr.mxu0 0.0
        %1128 = vmatpush1.msra.mxu0 %v1056
        %1129 = vmatprep.mubr.f32.mxu0 %v992
        %1130 = vmatmul.mubr.f32.gmra.mrb[0].mxu0 %v991
        %v1131 = vpop.f32.mrb[0].mxu0
        %v1132 = vadd.f32 %v1063, %v1131
        %v1133 = vpop.f32.mrb[0].mxu0
        %1134 = vmatprep.mubr.f32.mxu0 %v994
        %1135 = vmatmul.mubr.f32.gmra.mrb[0].mxu0 %v993
        %v1136 = vpop.f32.mrb[0].mxu0
        %v1137 = vadd.f32 %v1063, %v1136
        %v1138 = vpop.f32.mrb[0].mxu0
        %1139 = vmatprep.mubr.f32.mxu0 %v996
        %1140 = vmatmul.mubr.f32.gmra.mrb[0].mxu0 %v995
        %v1141 = vpop.f32.mrb[0].mxu0
        %v1142 = vadd.f32 %v1063, %v1141
        %v1143 = vpop.f32.mrb[0].mxu0
        %1144 = vmatprep.mubr.f32.mxu0 %v998
        %1145 = vmatmul.mubr.f32.gmra.mrb[0].mxu0 %v997
        %v1146 = vpop.f32.mrb[0].mxu0
        %v1147 = vadd.f32 %v1063, %v1146
        %v1148 = vpop.f32.mrb[0].mxu0
        %1149 = vmatprep.mubr.f32.mxu0 %v1000
        %1150 = vmatmul.mubr.f32.gmra.mrb[0].mxu0 %v999
        %v1151 = vpop.f32.mrb[0].mxu0
        %v1152 = vadd.f32 %v1063, %v1151
        %v1153 = vpop.f32.mrb[0].mxu0
        %1154 = vmatprep.mubr.f32.mxu0 %v1002
        %1155 = vmatmul.mubr.f32.gmra.mrb[0].mxu0 %v1001
        %v1156 = vpop.f32.mrb[0].mxu0
        %v1157 = vadd.f32 %v1063, %v1156
        %v1158 = vpop.f32.mrb[0].mxu0
        %1159 = vmatprep.mubr.f32.mxu0 %v1004
        %1160 = vmatmul.mubr.f32.gmra.mrb[0].mxu0 %v1003
        %v1161 = vpop.f32.mrb[0].mxu0
        %v1162 = vadd.f32 %v1063, %v1161
        %v1163 = vpop.f32.mrb[0].mxu0
        %1164 = vmatprep.mubr.f32.mxu0 %v1006
        %1165 = vmatmul.mubr.f32.gmra.mrb[0].mxu0 %v1005
        %v1166 = vpop.f32.mrb[0].mxu0
        %v1167 = vadd.f32 %v1063, %v1166
        %v1168 = vpop.f32.mrb[0].mxu0
        %1169 = vmatprep.mubr.f32.mxu0 %v1008
        %1170 = vmatmul.mubr.f32.gmra.mrb[0].mxu0 %v1007
        %v1171 = vpop.f32.mrb[0].mxu0
        %v1172 = vadd.f32 %v1063, %v1171
        %v1173 = vpop.f32.mrb[0].mxu0
        %1174 = vmatprep.mubr.f32.mxu0 %v1010
        %1175 = vmatmul.mubr.f32.gmra.mrb[0].mxu0 %v1009
        %v1176 = vpop.f32.mrb[0].mxu0
        %v1177 = vadd.f32 %v1063, %v1176
        %v1178 = vpop.f32.mrb[0].mxu0
        %1179 = vmatprep.mubr.f32.mxu0 %v1012
        %1180 = vmatmul.mubr.f32.gmra.mrb[0].mxu0 %v1011
        %v1181 = vpop.f32.mrb[0].mxu0
        %v1182 = vadd.f32 %v1063, %v1181
        %v1183 = vpop.f32.mrb[0].mxu0
        %1184 = vmatprep.mubr.f32.mxu0 %v1014
        %1185 = vmatmul.mubr.f32.gmra.mrb[0].mxu0 %v1013
        %v1186 = vpop.f32.mrb[0].mxu0
        %v1187 = vadd.f32 %v1063, %v1186
        %v1188 = vpop.f32.mrb[0].mxu0
        %1189 = vmatprep.mubr.f32.mxu0 %v1016
        %1190 = vmatmul.mubr.f32.gmra.mrb[0].mxu0 %v1015
        %v1191 = vpop.f32.mrb[0].mxu0
        %v1192 = vadd.f32 %v1063, %v1191
        %v1193 = vpop.f32.mrb[0].mxu0
        %1194 = vmatprep.mubr.f32.mxu0 %v1018
        %1195 = vmatmul.mubr.f32.gmra.mrb[0].mxu0 %v1017
        %v1196 = vpop.f32.mrb[0].mxu0
        %v1197 = vadd.f32 %v1063, %v1196
        %v1198 = vpop.f32.mrb[0].mxu0
        %1199 = vmatprep.mubr.f32.mxu0 %v1020
        %1200 = vmatmul.mubr.f32.gmra.mrb[0].mxu0 %v1019
        %v1201 = vpop.f32.mrb[0].mxu0
        %v1202 = vadd.f32 %v1063, %v1201
        %v1203 = vpop.f32.mrb[0].mxu0
        %1204 = vmatprep.mubr.f32.mxu0 %v1022
        %1205 = vmatmul.mubr.f32.gmra.mrb[0].mxu0 %v1021
        %v1206 = vpop.f32.mrb[0].mxu0
        %v1207 = vadd.f32 %v1063, %v1206
        %v1208 = vpop.f32.mrb[0].mxu0
        %1209 = vdwg.mxu0
        %s1210 = smul.u32 %s41, 128
        %s1211 = scalar_lea.vmem [#allocation2], %s1210
        %v1212 = vld [vmem:[%s1211] sm:$0xff]
        %v1213 = vld [vmem:[%s1211 + $0x8] sm:$0xff]
        %v1214 = vld [vmem:[%s1211 + $0x10] sm:$0xff]
        %v1215 = vld [vmem:[%s1211 + $0x18] sm:$0xff]
        %v1216 = vld [vmem:[%s1211 + $0x20] sm:$0xff]
        %v1217 = vld [vmem:[%s1211 + $0x28] sm:$0xff]
        %v1218 = vld [vmem:[%s1211 + $0x30] sm:$0xff]
        %v1219 = vld [vmem:[%s1211 + $0x38] sm:$0xff]
        %v1220 = vld [vmem:[%s1211 + $0x40] sm:$0xff]
        %v1221 = vld [vmem:[%s1211 + $0x48] sm:$0xff]
        %v1222 = vld [vmem:[%s1211 + $0x50] sm:$0xff]
        %v1223 = vld [vmem:[%s1211 + $0x58] sm:$0xff]
        %v1224 = vld [vmem:[%s1211 + $0x60] sm:$0xff]
        %v1225 = vld [vmem:[%s1211 + $0x68] sm:$0xff]
        %v1226 = vld [vmem:[%s1211 + $0x70] sm:$0xff]
        %v1227 = vld [vmem:[%s1211 + $0x78] sm:$0xff]
        %s1228 = scalar_lea.vmem [#allocation3], %s1210
        %v1229 = vld [vmem:[%s1228] sm:$0xff]
        %v1230 = vld [vmem:[%s1228 + $0x8] sm:$0xff]
        %v1231 = vld [vmem:[%s1228 + $0x10] sm:$0xff]
        %v1232 = vld [vmem:[%s1228 + $0x18] sm:$0xff]
        %v1233 = vld [vmem:[%s1228 + $0x20] sm:$0xff]
        %v1234 = vld [vmem:[%s1228 + $0x28] sm:$0xff]
        %v1235 = vld [vmem:[%s1228 + $0x30] sm:$0xff]
        %v1236 = vld [vmem:[%s1228 + $0x38] sm:$0xff]
        %v1237 = vld [vmem:[%s1228 + $0x40] sm:$0xff]
        %v1238 = vld [vmem:[%s1228 + $0x48] sm:$0xff]
        %v1239 = vld [vmem:[%s1228 + $0x50] sm:$0xff]
        %v1240 = vld [vmem:[%s1228 + $0x58] sm:$0xff]
        %v1241 = vld [vmem:[%s1228 + $0x60] sm:$0xff]
        %v1242 = vld [vmem:[%s1228 + $0x68] sm:$0xff]
        %v1243 = vld [vmem:[%s1228 + $0x70] sm:$0xff]
        %v1244 = vld [vmem:[%s1228 + $0x78] sm:$0xff]
        %1245 = vmatprep.subr.mxu0 0.0
        %1246 = vmatpush1.xpose.msra.mxu0 %v1212
        %1247 = vmatprep.subr.mxu0 0.0
        %1248 = vmatpush1.xpose.msra.mxu0 %v1213
        %1249 = vmatprep.subr.mxu0 0.0
        %1250 = vmatpush1.xpose.msra.mxu0 %v1214
        %1251 = vmatprep.subr.mxu0 0.0
        %1252 = vmatpush1.xpose.msra.mxu0 %v1215
        %1253 = vmatprep.subr.mxu0 0.0
        %1254 = vmatpush1.xpose.msra.mxu0 %v1216
        %1255 = vmatprep.subr.mxu0 0.0
        %1256 = vmatpush1.xpose.msra.mxu0 %v1217
        %1257 = vmatprep.subr.mxu0 0.0
        %1258 = vmatpush1.xpose.msra.mxu0 %v1218
        %1259 = vmatprep.subr.mxu0 0.0
        %1260 = vmatpush1.xpose.msra.mxu0 %v1219
        %1261 = vmatprep.subr.mxu0 0.0
        %1262 = vmatpush1.xpose.msra.mxu0 %v1220
        %1263 = vmatprep.subr.mxu0 0.0
        %1264 = vmatpush1.xpose.msra.mxu0 %v1221
        %1265 = vmatprep.subr.mxu0 0.0
        %1266 = vmatpush1.xpose.msra.mxu0 %v1222
        %1267 = vmatprep.subr.mxu0 0.0
        %1268 = vmatpush1.xpose.msra.mxu0 %v1223
        %1269 = vmatprep.subr.mxu0 0.0
        %1270 = vmatpush1.xpose.msra.mxu0 %v1224
        %1271 = vmatprep.subr.mxu0 0.0
        %1272 = vmatpush1.xpose.msra.mxu0 %v1225
        %1273 = vmatprep.subr.mxu0 0.0
        %1274 = vmatpush1.xpose.msra.mxu0 %v1226
        %1275 = vmatprep.subr.mxu0 0.0
        %1276 = vmatpush1.xpose.msra.mxu0 %v1227
        %1277 = vmatprep.subr.mxu0 0.0
        %1278 = vmatpush1.xpose.msra.mxu0 0.0
        %1279 = vmatprep.subr.mxu0 0.0
        %1280 = vmatpush1.xpose.msra.mxu0 0.0
        %1281 = vmatprep.subr.mxu0 0.0
        %1282 = vmatpush1.xpose.msra.mxu0 0.0
        %1283 = vmatprep.subr.mxu0 0.0
        %1284 = vmatpush1.xpose.msra.mxu0 0.0
        %1285 = vmatprep.subr.mxu0 0.0
        %1286 = vmatpush1.xpose.msra.mxu0 0.0
        %1287 = vmatprep.subr.mxu0 0.0
        %1288 = vmatpush1.xpose.msra.mxu0 0.0
        %1289 = vmatprep.subr.mxu0 0.0
        %1290 = vmatpush1.xpose.msra.mxu0 0.0
        %1291 = vmatprep.subr.mxu0 0.0
        %1292 = vmatpush1.xpose.msra.mxu0 0.0
        %1293 = vmatprep.subr.mxu0 0.0
        %1294 = vmatpush1.xpose.msra.mxu0 0.0
        %1295 = vmatprep.subr.mxu0 0.0
        %1296 = vmatpush1.xpose.msra.mxu0 0.0
        %1297 = vmatprep.subr.mxu0 0.0
        %1298 = vmatpush1.xpose.msra.mxu0 0.0
        %1299 = vmatprep.subr.mxu0 0.0
        %1300 = vmatpush1.xpose.msra.mxu0 0.0
        %1301 = vmatprep.subr.mxu0 0.0
        %1302 = vmatpush1.xpose.msra.mxu0 0.0
        %1303 = vmatprep.subr.mxu0 0.0
        %1304 = vmatpush1.xpose.msra.mxu0 0.0
        %1305 = vmatprep.subr.mxu0 0.0
        %1306 = vmatpush1.xpose.msra.mxu0 0.0
        %1307 = vmatprep.subr.mxu0 0.0
        %1308 = vmatpush1.xpose.msra.mxu0 0.0
        %1309 = vmatprep.mubr.f32.mxu0 0.0
        %1310 = vmatmul.mubr.f32.gmra.mrb[0].mxu0 %v1132
        %v1311 = vpop.f32.mrb[0].mxu0
        %v1312 = vadd.f32 0.0, %v1311
        %v1313 = vpop.f32.mrb[0].mxu0
        %1314 = vmatprep.mubr.f32.mxu0 0.0
        %1315 = vmatmul.mubr.f32.gmra.mrb[0].mxu0 %v1137
        %v1316 = vpop.f32.mrb[0].mxu0
        %v1317 = vadd.f32 0.0, %v1316
        %v1318 = vpop.f32.mrb[0].mxu0
        %1319 = vmatprep.mubr.f32.mxu0 0.0
        %1320 = vmatmul.mubr.f32.gmra.mrb[0].mxu0 %v1142
        %v1321 = vpop.f32.mrb[0].mxu0
        %v1322 = vadd.f32 0.0, %v1321
        %v1323 = vpop.f32.mrb[0].mxu0
        %1324 = vmatprep.mubr.f32.mxu0 0.0
        %1325 = vmatmul.mubr.f32.gmra.mrb[0].mxu0 %v1147
        %v1326 = vpop.f32.mrb[0].mxu0
        %v1327 = vadd.f32 0.0, %v1326
        %v1328 = vpop.f32.mrb[0].mxu0
        %1329 = vmatprep.mubr.f32.mxu0 0.0
        %1330 = vmatmul.mubr.f32.gmra.mrb[0].mxu0 %v1152
        %v1331 = vpop.f32.mrb[0].mxu0
        %v1332 = vadd.f32 0.0, %v1331
        %v1333 = vpop.f32.mrb[0].mxu0
        %1334 = vmatprep.mubr.f32.mxu0 0.0
        %1335 = vmatmul.mubr.f32.gmra.mrb[0].mxu0 %v1157
        %v1336 = vpop.f32.mrb[0].mxu0
        %v1337 = vadd.f32 0.0, %v1336
        %v1338 = vpop.f32.mrb[0].mxu0
        %1339 = vmatprep.mubr.f32.mxu0 0.0
        %1340 = vmatmul.mubr.f32.gmra.mrb[0].mxu0 %v1162
        %v1341 = vpop.f32.mrb[0].mxu0
        %v1342 = vadd.f32 0.0, %v1341
        %v1343 = vpop.f32.mrb[0].mxu0
        %1344 = vmatprep.mubr.f32.mxu0 0.0
        %1345 = vmatmul.mubr.f32.gmra.mrb[0].mxu0 %v1167
        %v1346 = vpop.f32.mrb[0].mxu0
        %v1347 = vadd.f32 0.0, %v1346
        %v1348 = vpop.f32.mrb[0].mxu0
        %1349 = vmatprep.mubr.f32.mxu0 0.0
        %1350 = vmatmul.mubr.f32.gmra.mrb[0].mxu0 %v1172
        %v1351 = vpop.f32.mrb[0].mxu0
        %v1352 = vadd.f32 0.0, %v1351
        %v1353 = vpop.f32.mrb[0].mxu0
        %1354 = vmatprep.mubr.f32.mxu0 0.0
        %1355 = vmatmul.mubr.f32.gmra.mrb[0].mxu0 %v1177
        %v1356 = vpop.f32.mrb[0].mxu0
        %v1357 = vadd.f32 0.0, %v1356
        %v1358 = vpop.f32.mrb[0].mxu0
        %1359 = vmatprep.mubr.f32.mxu0 0.0
        %1360 = vmatmul.mubr.f32.gmra.mrb[0].mxu0 %v1182
        %v1361 = vpop.f32.mrb[0].mxu0
        %v1362 = vadd.f32 0.0, %v1361
        %v1363 = vpop.f32.mrb[0].mxu0
        %1364 = vmatprep.mubr.f32.mxu0 0.0
        %1365 = vmatmul.mubr.f32.gmra.mrb[0].mxu0 %v1187
        %v1366 = vpop.f32.mrb[0].mxu0
        %v1367 = vadd.f32 0.0, %v1366
        %v1368 = vpop.f32.mrb[0].mxu0
        %1369 = vmatprep.mubr.f32.mxu0 0.0
        %1370 = vmatmul.mubr.f32.gmra.mrb[0].mxu0 %v1192
        %v1371 = vpop.f32.mrb[0].mxu0
        %v1372 = vadd.f32 0.0, %v1371
        %v1373 = vpop.f32.mrb[0].mxu0
        %1374 = vmatprep.mubr.f32.mxu0 0.0
        %1375 = vmatmul.mubr.f32.gmra.mrb[0].mxu0 %v1197
        %v1376 = vpop.f32.mrb[0].mxu0
        %v1377 = vadd.f32 0.0, %v1376
        %v1378 = vpop.f32.mrb[0].mxu0
        %1379 = vmatprep.mubr.f32.mxu0 0.0
        %1380 = vmatmul.mubr.f32.gmra.mrb[0].mxu0 %v1202
        %v1381 = vpop.f32.mrb[0].mxu0
        %v1382 = vadd.f32 0.0, %v1381
        %v1383 = vpop.f32.mrb[0].mxu0
        %1384 = vmatprep.mubr.f32.mxu0 0.0
        %1385 = vmatmul.mubr.f32.gmra.mrb[0].mxu0 %v1207
        %v1386 = vpop.f32.mrb[0].mxu0
        %v1387 = vadd.f32 0.0, %v1386
        %v1388 = vpop.f32.mrb[0].mxu0
        %1389 = vdwg.mxu0
        %1390 = vmax.xlane.f32.xlu0 %v1312
        %v1391 = vpop.xlane.xlu0 %1390
        %1392 = vmax.xlane.f32.xlu0 %v1317
        %v1393 = vpop.xlane.xlu0 %1392
        %1394 = vmax.xlane.f32.xlu0 %v1322
        %v1395 = vpop.xlane.xlu0 %1394
        %1396 = vmax.xlane.f32.xlu0 %v1327
        %v1397 = vpop.xlane.xlu0 %1396
        %1398 = vmax.xlane.f32.xlu0 %v1332
        %v1399 = vpop.xlane.xlu0 %1398
        %1400 = vmax.xlane.f32.xlu0 %v1337
        %v1401 = vpop.xlane.xlu0 %1400
        %1402 = vmax.xlane.f32.xlu0 %v1342
        %v1403 = vpop.xlane.xlu0 %1402
        %1404 = vmax.xlane.f32.xlu0 %v1347
        %v1405 = vpop.xlane.xlu0 %1404
        %1406 = vmax.xlane.f32.xlu0 %v1352
        %v1407 = vpop.xlane.xlu0 %1406
        %1408 = vmax.xlane.f32.xlu0 %v1357
        %v1409 = vpop.xlane.xlu0 %1408
        %1410 = vmax.xlane.f32.xlu0 %v1362
        %v1411 = vpop.xlane.xlu0 %1410
        %1412 = vmax.xlane.f32.xlu0 %v1367
        %v1413 = vpop.xlane.xlu0 %1412
        %1414 = vmax.xlane.f32.xlu0 %v1372
        %v1415 = vpop.xlane.xlu0 %1414
        %1416 = vmax.xlane.f32.xlu0 %v1377
        %v1417 = vpop.xlane.xlu0 %1416
        %1418 = vmax.xlane.f32.xlu0 %v1382
        %v1419 = vpop.xlane.xlu0 %1418
        %1420 = vmax.xlane.f32.xlu0 %v1387
        %v1421 = vpop.xlane.xlu0 %1420
        %v1422 = vsub.f32 %v1312, %v1391
        %v1423 = vsub.f32 %v1317, %v1393
        %v1424 = vsub.f32 %v1322, %v1395
        %v1425 = vsub.f32 %v1327, %v1397
        %v1426 = vsub.f32 %v1332, %v1399
        %v1427 = vsub.f32 %v1337, %v1401
        %v1428 = vsub.f32 %v1342, %v1403
        %v1429 = vsub.f32 %v1347, %v1405
        %v1430 = vsub.f32 %v1352, %v1407
        %v1431 = vsub.f32 %v1357, %v1409
        %v1432 = vsub.f32 %v1362, %v1411
        %v1433 = vsub.f32 %v1367, %v1413
        %v1434 = vsub.f32 %v1372, %v1415
        %v1435 = vsub.f32 %v1377, %v1417
        %v1436 = vsub.f32 %v1382, %v1419
        %v1437 = vsub.f32 %v1387, %v1421
        %v1438 = vmul.f32 %v1422, 1.442695
        %v1439 = vpow.pop %v1438
        %v1440 = vmul.f32 %v1423, 1.442695
        %v1441 = vpow.pop %v1440
        %v1442 = vmul.f32 %v1424, 1.442695
        %v1443 = vpow.pop %v1442
        %v1444 = vmul.f32 %v1425, 1.442695
        %v1445 = vpow.pop %v1444
        %v1446 = vmul.f32 %v1426, 1.442695
        %v1447 = vpow.pop %v1446
        %v1448 = vmul.f32 %v1427, 1.442695
        %v1449 = vpow.pop %v1448
        %v1450 = vmul.f32 %v1428, 1.442695
        %v1451 = vpow.pop %v1450
        %v1452 = vmul.f32 %v1429, 1.442695
        %v1453 = vpow.pop %v1452
        %v1454 = vmul.f32 %v1430, 1.442695
        %v1455 = vpow.pop %v1454
        %v1456 = vmul.f32 %v1431, 1.442695
        %v1457 = vpow.pop %v1456
        %v1458 = vmul.f32 %v1432, 1.442695
        %v1459 = vpow.pop %v1458
        %v1460 = vmul.f32 %v1433, 1.442695
        %v1461 = vpow.pop %v1460
        %v1462 = vmul.f32 %v1434, 1.442695
        %v1463 = vpow.pop %v1462
        %v1464 = vmul.f32 %v1435, 1.442695
        %v1465 = vpow.pop %v1464
        %v1466 = vmul.f32 %v1436, 1.442695
        %v1467 = vpow.pop %v1466
        %v1468 = vmul.f32 %v1437, 1.442695
        %v1469 = vpow.pop %v1468
        %1470 = vadd.xlane.f32.xlu0 %v1439
        %v1471 = vpop.xlane.xlu0 %1470
        %1472 = vadd.xlane.f32.xlu0 %v1441
        %v1473 = vpop.xlane.xlu0 %1472
        %1474 = vadd.xlane.f32.xlu0 %v1443
        %v1475 = vpop.xlane.xlu0 %1474
        %1476 = vadd.xlane.f32.xlu0 %v1445
        %v1477 = vpop.xlane.xlu0 %1476
        %1478 = vadd.xlane.f32.xlu0 %v1447
        %v1479 = vpop.xlane.xlu0 %1478
        %1480 = vadd.xlane.f32.xlu0 %v1449
        %v1481 = vpop.xlane.xlu0 %1480
        %1482 = vadd.xlane.f32.xlu0 %v1451
        %v1483 = vpop.xlane.xlu0 %1482
        %1484 = vadd.xlane.f32.xlu0 %v1453
        %v1485 = vpop.xlane.xlu0 %1484
        %1486 = vadd.xlane.f32.xlu0 %v1455
        %v1487 = vpop.xlane.xlu0 %1486
        %1488 = vadd.xlane.f32.xlu0 %v1457
        %v1489 = vpop.xlane.xlu0 %1488
        %1490 = vadd.xlane.f32.xlu0 %v1459
        %v1491 = vpop.xlane.xlu0 %1490
        %1492 = vadd.xlane.f32.xlu0 %v1461
        %v1493 = vpop.xlane.xlu0 %1492
        %1494 = vadd.xlane.f32.xlu0 %v1463
        %v1495 = vpop.xlane.xlu0 %1494
        %1496 = vadd.xlane.f32.xlu0 %v1465
        %v1497 = vpop.xlane.xlu0 %1496
        %1498 = vadd.xlane.f32.xlu0 %v1467
        %v1499 = vpop.xlane.xlu0 %1498
        %1500 = vadd.xlane.f32.xlu0 %v1469
        %v1501 = vpop.xlane.xlu0 %1500
        %v1502 = vrcp.pop %v1471
        %v1503 = vrcp.pop %v1473
        %v1504 = vrcp.pop %v1475
        %v1505 = vrcp.pop %v1477
        %v1506 = vrcp.pop %v1479
        %v1507 = vrcp.pop %v1481
        %v1508 = vrcp.pop %v1483
        %v1509 = vrcp.pop %v1485
        %v1510 = vrcp.pop %v1487
        %v1511 = vrcp.pop %v1489
        %v1512 = vrcp.pop %v1491
        %v1513 = vrcp.pop %v1493
        %v1514 = vrcp.pop %v1495
        %v1515 = vrcp.pop %v1497
        %v1516 = vrcp.pop %v1499
        %v1517 = vrcp.pop %v1501
        %v1518 = vmul.f32 %v1439, %v1502
        %v1519 = vmul.f32 %v1441, %v1503
        %v1520 = vmul.f32 %v1443, %v1504
        %v1521 = vmul.f32 %v1445, %v1505
        %v1522 = vmul.f32 %v1447, %v1506
        %v1523 = vmul.f32 %v1449, %v1507
        %v1524 = vmul.f32 %v1451, %v1508
        %v1525 = vmul.f32 %v1453, %v1509
        %v1526 = vmul.f32 %v1455, %v1510
        %v1527 = vmul.f32 %v1457, %v1511
        %v1528 = vmul.f32 %v1459, %v1512
        %v1529 = vmul.f32 %v1461, %v1513
        %v1530 = vmul.f32 %v1463, %v1514
        %v1531 = vmul.f32 %v1465, %v1515
        %v1532 = vmul.f32 %v1467, %v1516
        %v1533 = vmul.f32 %v1469, %v1517
        %1534 = vmatprep.subr.mxu0 0.0
        %1535 = vmatpush1.msra.mxu0 %v1229
        %1536 = vmatprep.subr.mxu0 0.0
        %1537 = vmatpush1.msra.mxu0 %v1230
        %1538 = vmatprep.subr.mxu0 0.0
        %1539 = vmatpush1.msra.mxu0 %v1231
        %1540 = vmatprep.subr.mxu0 0.0
        %1541 = vmatpush1.msra.mxu0 %v1232
        %1542 = vmatprep.subr.mxu0 0.0
        %1543 = vmatpush1.msra.mxu0 %v1233
        %1544 = vmatprep.subr.mxu0 0.0
        %1545 = vmatpush1.msra.mxu0 %v1234
        %1546 = vmatprep.subr.mxu0 0.0
        %1547 = vmatpush1.msra.mxu0 %v1235
        %1548 = vmatprep.subr.mxu0 0.0
        %1549 = vmatpush1.msra.mxu0 %v1236
        %1550 = vmatprep.subr.mxu0 0.0
        %1551 = vmatpush1.msra.mxu0 %v1237
        %1552 = vmatprep.subr.mxu0 0.0
        %1553 = vmatpush1.msra.mxu0 %v1238
        %1554 = vmatprep.subr.mxu0 0.0
        %1555 = vmatpush1.msra.mxu0 %v1239
        %1556 = vmatprep.subr.mxu0 0.0
        %1557 = vmatpush1.msra.mxu0 %v1240
        %1558 = vmatprep.subr.mxu0 0.0
        %1559 = vmatpush1.msra.mxu0 %v1241
        %1560 = vmatprep.subr.mxu0 0.0
        %1561 = vmatpush1.msra.mxu0 %v1242
        %1562 = vmatprep.subr.mxu0 0.0
        %1563 = vmatpush1.msra.mxu0 %v1243
        %1564 = vmatprep.subr.mxu0 0.0
        %1565 = vmatpush1.msra.mxu0 %v1244
        %1566 = vmatprep.subr.mxu0 0.0
        %1567 = vmatpush1.msra.mxu0 0.0
        %1568 = vmatprep.subr.mxu0 0.0
        %1569 = vmatpush1.msra.mxu0 0.0
        %1570 = vmatprep.subr.mxu0 0.0
        %1571 = vmatpush1.msra.mxu0 0.0
        %1572 = vmatprep.subr.mxu0 0.0
        %1573 = vmatpush1.msra.mxu0 0.0
        %1574 = vmatprep.subr.mxu0 0.0
        %1575 = vmatpush1.msra.mxu0 0.0
        %1576 = vmatprep.subr.mxu0 0.0
        %1577 = vmatpush1.msra.mxu0 0.0
        %1578 = vmatprep.subr.mxu0 0.0
        %1579 = vmatpush1.msra.mxu0 0.0
        %1580 = vmatprep.subr.mxu0 0.0
        %1581 = vmatpush1.msra.mxu0 0.0
        %1582 = vmatprep.subr.mxu0 0.0
        %1583 = vmatpush1.msra.mxu0 0.0
        %1584 = vmatprep.subr.mxu0 0.0
        %1585 = vmatpush1.msra.mxu0 0.0
        %1586 = vmatprep.subr.mxu0 0.0
        %1587 = vmatpush1.msra.mxu0 0.0
        %1588 = vmatprep.subr.mxu0 0.0
        %1589 = vmatpush1.msra.mxu0 0.0
        %1590 = vmatprep.subr.mxu0 0.0
        %1591 = vmatpush1.msra.mxu0 0.0
        %1592 = vmatprep.subr.mxu0 0.0
        %1593 = vmatpush1.msra.mxu0 0.0
        %1594 = vmatprep.subr.mxu0 0.0
        %1595 = vmatpush1.msra.mxu0 0.0
        %1596 = vmatprep.subr.mxu0 0.0
        %1597 = vmatpush1.msra.mxu0 0.0
        %1598 = vmatprep.mubr.f32.mxu0 0.0
        %1599 = vmatmul.mubr.f32.gmra.mrb[0].mxu0 %v1518
        %v1600 = vpop.f32.mrb[0].mxu0
        %v1601 = vadd.f32 0.0, %v1600
        %v1602 = vpop.f32.mrb[0].mxu0
        %1603 = vmatprep.mubr.f32.mxu0 0.0
        %1604 = vmatmul.mubr.f32.gmra.mrb[0].mxu0 %v1519
        %v1605 = vpop.f32.mrb[0].mxu0
        %v1606 = vadd.f32 0.0, %v1605
        %v1607 = vpop.f32.mrb[0].mxu0
        %1608 = vmatprep.mubr.f32.mxu0 0.0
        %1609 = vmatmul.mubr.f32.gmra.mrb[0].mxu0 %v1520
        %v1610 = vpop.f32.mrb[0].mxu0
        %v1611 = vadd.f32 0.0, %v1610
        %v1612 = vpop.f32.mrb[0].mxu0
        %1613 = vmatprep.mubr.f32.mxu0 0.0
        %1614 = vmatmul.mubr.f32.gmra.mrb[0].mxu0 %v1521
        %v1615 = vpop.f32.mrb[0].mxu0
        %v1616 = vadd.f32 0.0, %v1615
        %v1617 = vpop.f32.mrb[0].mxu0
        %1618 = vmatprep.mubr.f32.mxu0 0.0
        %1619 = vmatmul.mubr.f32.gmra.mrb[0].mxu0 %v1522
        %v1620 = vpop.f32.mrb[0].mxu0
        %v1621 = vadd.f32 0.0, %v1620
        %v1622 = vpop.f32.mrb[0].mxu0
        %1623 = vmatprep.mubr.f32.mxu0 0.0
        %1624 = vmatmul.mubr.f32.gmra.mrb[0].mxu0 %v1523
        %v1625 = vpop.f32.mrb[0].mxu0
        %v1626 = vadd.f32 0.0, %v1625
        %v1627 = vpop.f32.mrb[0].mxu0
        %1628 = vmatprep.mubr.f32.mxu0 0.0
        %1629 = vmatmul.mubr.f32.gmra.mrb[0].mxu0 %v1524
        %v1630 = vpop.f32.mrb[0].mxu0
        %v1631 = vadd.f32 0.0, %v1630
        %v1632 = vpop.f32.mrb[0].mxu0
        %1633 = vmatprep.mubr.f32.mxu0 0.0
        %1634 = vmatmul.mubr.f32.gmra.mrb[0].mxu0 %v1525
        %v1635 = vpop.f32.mrb[0].mxu0
        %v1636 = vadd.f32 0.0, %v1635
        %v1637 = vpop.f32.mrb[0].mxu0
        %1638 = vmatprep.mubr.f32.mxu0 0.0
        %1639 = vmatmul.mubr.f32.gmra.mrb[0].mxu0 %v1526
        %v1640 = vpop.f32.mrb[0].mxu0
        %v1641 = vadd.f32 0.0, %v1640
        %v1642 = vpop.f32.mrb[0].mxu0
        %1643 = vmatprep.mubr.f32.mxu0 0.0
        %1644 = vmatmul.mubr.f32.gmra.mrb[0].mxu0 %v1527
        %v1645 = vpop.f32.mrb[0].mxu0
        %v1646 = vadd.f32 0.0, %v1645
        %v1647 = vpop.f32.mrb[0].mxu0
        %1648 = vmatprep.mubr.f32.mxu0 0.0
        %1649 = vmatmul.mubr.f32.gmra.mrb[0].mxu0 %v1528
        %v1650 = vpop.f32.mrb[0].mxu0
        %v1651 = vadd.f32 0.0, %v1650
        %v1652 = vpop.f32.mrb[0].mxu0
        %1653 = vmatprep.mubr.f32.mxu0 0.0
        %1654 = vmatmul.mubr.f32.gmra.mrb[0].mxu0 %v1529
        %v1655 = vpop.f32.mrb[0].mxu0
        %v1656 = vadd.f32 0.0, %v1655
        %v1657 = vpop.f32.mrb[0].mxu0
        %1658 = vmatprep.mubr.f32.mxu0 0.0
        %1659 = vmatmul.mubr.f32.gmra.mrb[0].mxu0 %v1530
        %v1660 = vpop.f32.mrb[0].mxu0
        %v1661 = vadd.f32 0.0, %v1660
        %v1662 = vpop.f32.mrb[0].mxu0
        %1663 = vmatprep.mubr.f32.mxu0 0.0
        %1664 = vmatmul.mubr.f32.gmra.mrb[0].mxu0 %v1531
        %v1665 = vpop.f32.mrb[0].mxu0
        %v1666 = vadd.f32 0.0, %v1665
        %v1667 = vpop.f32.mrb[0].mxu0
        %1668 = vmatprep.mubr.f32.mxu0 0.0
        %1669 = vmatmul.mubr.f32.gmra.mrb[0].mxu0 %v1532
        %v1670 = vpop.f32.mrb[0].mxu0
        %v1671 = vadd.f32 0.0, %v1670
        %v1672 = vpop.f32.mrb[0].mxu0
        %1673 = vmatprep.mubr.f32.mxu0 0.0
        %1674 = vmatmul.mubr.f32.gmra.mrb[0].mxu0 %v1533
        %v1675 = vpop.f32.mrb[0].mxu0
        %v1676 = vadd.f32 0.0, %v1675
        %v1677 = vpop.f32.mrb[0].mxu0
        %1678 = vdwg.mxu0
        %v1679 = vld [vmem:[#allocation4] sm:$0xff]
        %v1680 = vld [vmem:[#allocation4 + $0x8] sm:$0xff]
        %v1681 = vld [vmem:[#allocation4 + $0x10] sm:$0xff]
        %v1682 = vld [vmem:[#allocation4 + $0x18] sm:$0xff]
        %v1683 = vld [vmem:[#allocation4 + $0x20] sm:$0xff]
        %v1684 = vld [vmem:[#allocation4 + $0x28] sm:$0xff]
        %v1685 = vld [vmem:[#allocation4 + $0x30] sm:$0xff]
        %v1686 = vld [vmem:[#allocation4 + $0x38] sm:$0xff]
        %v1687 = vld [vmem:[#allocation4 + $0x40] sm:$0xff]
        %v1688 = vld [vmem:[#allocation4 + $0x48] sm:$0xff]
        %v1689 = vld [vmem:[#allocation4 + $0x50] sm:$0xff]
        %v1690 = vld [vmem:[#allocation4 + $0x58] sm:$0xff]
        %v1691 = vld [vmem:[#allocation4 + $0x60] sm:$0xff]
        %v1692 = vld [vmem:[#allocation4 + $0x68] sm:$0xff]
        %v1693 = vld [vmem:[#allocation4 + $0x70] sm:$0xff]
        %v1694 = vld [vmem:[#allocation4 + $0x78] sm:$0xff]
        %v1695 = vld [vmem:[#allocation4 + $0x80] sm:$0xff]
        %v1696 = vld [vmem:[#allocation4 + $0x88] sm:$0xff]
        %v1697 = vld [vmem:[#allocation4 + $0x90] sm:$0xff]
        %v1698 = vld [vmem:[#allocation4 + $0x98] sm:$0xff]
        %v1699 = vld [vmem:[#allocation4 + $0xa0] sm:$0xff]
        %v1700 = vld [vmem:[#allocation4 + $0xa8] sm:$0xff]
        %v1701 = vld [vmem:[#allocation4 + $0xb0] sm:$0xff]
        %v1702 = vld [vmem:[#allocation4 + $0xb8] sm:$0xff]
        %v1703 = vld [vmem:[#allocation4 + $0xc0] sm:$0xff]
        %v1704 = vld [vmem:[#allocation4 + $0xc8] sm:$0xff]
        %v1705 = vld [vmem:[#allocation4 + $0xd0] sm:$0xff]
        %v1706 = vld [vmem:[#allocation4 + $0xd8] sm:$0xff]
        %v1707 = vld [vmem:[#allocation4 + $0xe0] sm:$0xff]
        %v1708 = vld [vmem:[#allocation4 + $0xe8] sm:$0xff]
        %v1709 = vld [vmem:[#allocation4 + $0xf0] sm:$0xff]
        %v1710 = vld [vmem:[#allocation4 + $0xf8] sm:$0xff]
        %s1711 = smul.u32 %s41, 32
        %s1712 = smul.addr %s1711, 8
        %s1713 = scalar_lea.vmem [#allocation19], %s1712
        %v1714 = vld [vmem:[%s1713] sm:$0xff]
        %v1715 = vld [vmem:[%s1713 + $0x8] sm:$0xff]
        %v1716 = vld [vmem:[%s1713 + $0x10] sm:$0xff]
        %v1717 = vld [vmem:[%s1713 + $0x18] sm:$0xff]
        %v1718 = vld [vmem:[%s1713 + $0x20] sm:$0xff]
        %v1719 = vld [vmem:[%s1713 + $0x28] sm:$0xff]
        %v1720 = vld [vmem:[%s1713 + $0x30] sm:$0xff]
        %v1721 = vld [vmem:[%s1713 + $0x38] sm:$0xff]
        %v1722 = vld [vmem:[%s1713 + $0x40] sm:$0xff]
        %v1723 = vld [vmem:[%s1713 + $0x48] sm:$0xff]
        %v1724 = vld [vmem:[%s1713 + $0x50] sm:$0xff]
        %v1725 = vld [vmem:[%s1713 + $0x58] sm:$0xff]
        %v1726 = vld [vmem:[%s1713 + $0x60] sm:$0xff]
        %v1727 = vld [vmem:[%s1713 + $0x68] sm:$0xff]
        %v1728 = vld [vmem:[%s1713 + $0x70] sm:$0xff]
        %v1729 = vld [vmem:[%s1713 + $0x78] sm:$0xff]
        %v1730 = vld [vmem:[%s1713 + $0x80] sm:$0xff]
        %v1731 = vld [vmem:[%s1713 + $0x88] sm:$0xff]
        %v1732 = vld [vmem:[%s1713 + $0x90] sm:$0xff]
        %v1733 = vld [vmem:[%s1713 + $0x98] sm:$0xff]
        %v1734 = vld [vmem:[%s1713 + $0xa0] sm:$0xff]
        %v1735 = vld [vmem:[%s1713 + $0xa8] sm:$0xff]
        %v1736 = vld [vmem:[%s1713 + $0xb0] sm:$0xff]
        %v1737 = vld [vmem:[%s1713 + $0xb8] sm:$0xff]
        %v1738 = vld [vmem:[%s1713 + $0xc0] sm:$0xff]
        %v1739 = vld [vmem:[%s1713 + $0xc8] sm:$0xff]
        %v1740 = vld [vmem:[%s1713 + $0xd0] sm:$0xff]
        %v1741 = vld [vmem:[%s1713 + $0xd8] sm:$0xff]
        %v1742 = vld [vmem:[%s1713 + $0xe0] sm:$0xff]
        %v1743 = vld [vmem:[%s1713 + $0xe8] sm:$0xff]
        %v1744 = vld [vmem:[%s1713 + $0xf0] sm:$0xff]
        %v1745 = vld [vmem:[%s1713 + $0xf8] sm:$0xff]
        %1746 = vmatprep.subr.mxu0 %v1715
        %1747 = vmatpush1.msra.mxu0 %v1714
        %1748 = vmatprep.subr.mxu0 %v1717
        %1749 = vmatpush1.msra.mxu0 %v1716
        %1750 = vmatprep.subr.mxu0 %v1719
        %1751 = vmatpush1.msra.mxu0 %v1718
        %1752 = vmatprep.subr.mxu0 %v1721
        %1753 = vmatpush1.msra.mxu0 %v1720
        %1754 = vmatprep.subr.mxu0 %v1723
        %1755 = vmatpush1.msra.mxu0 %v1722
        %1756 = vmatprep.subr.mxu0 %v1725
        %1757 = vmatpush1.msra.mxu0 %v1724
        %1758 = vmatprep.subr.mxu0 %v1727
        %1759 = vmatpush1.msra.mxu0 %v1726
        %1760 = vmatprep.subr.mxu0 %v1729
        %1761 = vmatpush1.msra.mxu0 %v1728
        %1762 = vmatprep.subr.mxu0 %v1731
        %1763 = vmatpush1.msra.mxu0 %v1730
        %1764 = vmatprep.subr.mxu0 %v1733
        %1765 = vmatpush1.msra.mxu0 %v1732
        %1766 = vmatprep.subr.mxu0 %v1735
        %1767 = vmatpush1.msra.mxu0 %v1734
        %1768 = vmatprep.subr.mxu0 %v1737
        %1769 = vmatpush1.msra.mxu0 %v1736
        %1770 = vmatprep.subr.mxu0 %v1739
        %1771 = vmatpush1.msra.mxu0 %v1738
        %1772 = vmatprep.subr.mxu0 %v1741
        %1773 = vmatpush1.msra.mxu0 %v1740
        %1774 = vmatprep.subr.mxu0 %v1743
        %1775 = vmatpush1.msra.mxu0 %v1742
        %1776 = vmatprep.subr.mxu0 %v1745
        %1777 = vmatpush1.msra.mxu0 %v1744
        %1778 = vmatprep.subr.mxu0 0.0
        %1779 = vmatpush1.msra.mxu0 0.0
        %1780 = vmatprep.subr.mxu0 0.0
        %1781 = vmatpush1.msra.mxu0 0.0
        %1782 = vmatprep.subr.mxu0 0.0
        %1783 = vmatpush1.msra.mxu0 0.0
        %1784 = vmatprep.subr.mxu0 0.0
        %1785 = vmatpush1.msra.mxu0 0.0
        %1786 = vmatprep.subr.mxu0 0.0
        %1787 = vmatpush1.msra.mxu0 0.0
        %1788 = vmatprep.subr.mxu0 0.0
        %1789 = vmatpush1.msra.mxu0 0.0
        %1790 = vmatprep.subr.mxu0 0.0
        %1791 = vmatpush1.msra.mxu0 0.0
        %1792 = vmatprep.subr.mxu0 0.0
        %1793 = vmatpush1.msra.mxu0 0.0
        %1794 = vmatprep.subr.mxu0 0.0
        %1795 = vmatpush1.msra.mxu0 0.0
        %1796 = vmatprep.subr.mxu0 0.0
        %1797 = vmatpush1.msra.mxu0 0.0
        %1798 = vmatprep.subr.mxu0 0.0
        %1799 = vmatpush1.msra.mxu0 0.0
        %1800 = vmatprep.subr.mxu0 0.0
        %1801 = vmatpush1.msra.mxu0 0.0
        %1802 = vmatprep.subr.mxu0 0.0
        %1803 = vmatpush1.msra.mxu0 0.0
        %1804 = vmatprep.subr.mxu0 0.0
        %1805 = vmatpush1.msra.mxu0 0.0
        %1806 = vmatprep.subr.mxu0 0.0
        %1807 = vmatpush1.msra.mxu0 0.0
        %1808 = vmatprep.subr.mxu0 0.0
        %1809 = vmatpush1.msra.mxu0 0.0
        %1810 = vmatprep.mubr.f32.mxu0 0.0
        %1811 = vmatmul.mubr.f32.gmra.mrb[0].mxu0 %v1601
        %v1812 = vpop.f32.mrb[0].mxu0
        %v1813 = vadd.f32 0.0, %v1812
        %v1814 = vpop.f32.mrb[0].mxu0
        %v1815 = vadd.f32 0.0, %v1814
        %1816 = vmatprep.mubr.f32.mxu0 0.0
        %1817 = vmatmul.mubr.f32.gmra.mrb[0].mxu0 %v1606
        %v1818 = vpop.f32.mrb[0].mxu0
        %v1819 = vadd.f32 0.0, %v1818
        %v1820 = vpop.f32.mrb[0].mxu0
        %v1821 = vadd.f32 0.0, %v1820
        %1822 = vmatprep.mubr.f32.mxu0 0.0
        %1823 = vmatmul.mubr.f32.gmra.mrb[0].mxu0 %v1611
        %v1824 = vpop.f32.mrb[0].mxu0
        %v1825 = vadd.f32 0.0, %v1824
        %v1826 = vpop.f32.mrb[0].mxu0
        %v1827 = vadd.f32 0.0, %v1826
        %1828 = vmatprep.mubr.f32.mxu0 0.0
        %1829 = vmatmul.mubr.f32.gmra.mrb[0].mxu0 %v1616
        %v1830 = vpop.f32.mrb[0].mxu0
        %v1831 = vadd.f32 0.0, %v1830
        %v1832 = vpop.f32.mrb[0].mxu0
        %v1833 = vadd.f32 0.0, %v1832
        %1834 = vmatprep.mubr.f32.mxu0 0.0
        %1835 = vmatmul.mubr.f32.gmra.mrb[0].mxu0 %v1621
        %v1836 = vpop.f32.mrb[0].mxu0
        %v1837 = vadd.f32 0.0, %v1836
        %v1838 = vpop.f32.mrb[0].mxu0
        %v1839 = vadd.f32 0.0, %v1838
        %1840 = vmatprep.mubr.f32.mxu0 0.0
        %1841 = vmatmul.mubr.f32.gmra.mrb[0].mxu0 %v1626
        %v1842 = vpop.f32.mrb[0].mxu0
        %v1843 = vadd.f32 0.0, %v1842
        %v1844 = vpop.f32.mrb[0].mxu0
        %v1845 = vadd.f32 0.0, %v1844
        %1846 = vmatprep.mubr.f32.mxu0 0.0
        %1847 = vmatmul.mubr.f32.gmra.mrb[0].mxu0 %v1631
        %v1848 = vpop.f32.mrb[0].mxu0
        %v1849 = vadd.f32 0.0, %v1848
        %v1850 = vpop.f32.mrb[0].mxu0
        %v1851 = vadd.f32 0.0, %v1850
        %1852 = vmatprep.mubr.f32.mxu0 0.0
        %1853 = vmatmul.mubr.f32.gmra.mrb[0].mxu0 %v1636
        %v1854 = vpop.f32.mrb[0].mxu0
        %v1855 = vadd.f32 0.0, %v1854
        %v1856 = vpop.f32.mrb[0].mxu0
        %v1857 = vadd.f32 0.0, %v1856
        %1858 = vmatprep.mubr.f32.mxu0 0.0
        %1859 = vmatmul.mubr.f32.gmra.mrb[0].mxu0 %v1641
        %v1860 = vpop.f32.mrb[0].mxu0
        %v1861 = vadd.f32 0.0, %v1860
        %v1862 = vpop.f32.mrb[0].mxu0
        %v1863 = vadd.f32 0.0, %v1862
        %1864 = vmatprep.mubr.f32.mxu0 0.0
        %1865 = vmatmul.mubr.f32.gmra.mrb[0].mxu0 %v1646
        %v1866 = vpop.f32.mrb[0].mxu0
        %v1867 = vadd.f32 0.0, %v1866
        %v1868 = vpop.f32.mrb[0].mxu0
        %v1869 = vadd.f32 0.0, %v1868
        %1870 = vmatprep.mubr.f32.mxu0 0.0
        %1871 = vmatmul.mubr.f32.gmra.mrb[0].mxu0 %v1651
        %v1872 = vpop.f32.mrb[0].mxu0
        %v1873 = vadd.f32 0.0, %v1872
        %v1874 = vpop.f32.mrb[0].mxu0
        %v1875 = vadd.f32 0.0, %v1874
        %1876 = vmatprep.mubr.f32.mxu0 0.0
        %1877 = vmatmul.mubr.f32.gmra.mrb[0].mxu0 %v1656
        %v1878 = vpop.f32.mrb[0].mxu0
        %v1879 = vadd.f32 0.0, %v1878
        %v1880 = vpop.f32.mrb[0].mxu0
        %v1881 = vadd.f32 0.0, %v1880
        %1882 = vmatprep.mubr.f32.mxu0 0.0
        %1883 = vmatmul.mubr.f32.gmra.mrb[0].mxu0 %v1661
        %v1884 = vpop.f32.mrb[0].mxu0
        %v1885 = vadd.f32 0.0, %v1884
        %v1886 = vpop.f32.mrb[0].mxu0
        %v1887 = vadd.f32 0.0, %v1886
        %1888 = vmatprep.mubr.f32.mxu0 0.0
        %1889 = vmatmul.mubr.f32.gmra.mrb[0].mxu0 %v1666
        %v1890 = vpop.f32.mrb[0].mxu0
        %v1891 = vadd.f32 0.0, %v1890
        %v1892 = vpop.f32.mrb[0].mxu0
        %v1893 = vadd.f32 0.0, %v1892
        %1894 = vmatprep.mubr.f32.mxu0 0.0
        %1895 = vmatmul.mubr.f32.gmra.mrb[0].mxu0 %v1671
        %v1896 = vpop.f32.mrb[0].mxu0
        %v1897 = vadd.f32 0.0, %v1896
        %v1898 = vpop.f32.mrb[0].mxu0
        %v1899 = vadd.f32 0.0, %v1898
        %1900 = vmatprep.mubr.f32.mxu0 0.0
        %1901 = vmatmul.mubr.f32.gmra.mrb[0].mxu0 %v1676
        %v1902 = vpop.f32.mrb[0].mxu0
        %v1903 = vadd.f32 0.0, %v1902
        %v1904 = vpop.f32.mrb[0].mxu0
        %v1905 = vadd.f32 0.0, %v1904
        %1906 = vdwg.mxu0
        %v1907 = vadd.f32 %v1679, %v1813
        %v1908 = vadd.f32 %v1680, %v1815
        %v1909 = vadd.f32 %v1681, %v1819
        %v1910 = vadd.f32 %v1682, %v1821
        %v1911 = vadd.f32 %v1683, %v1825
        %v1912 = vadd.f32 %v1684, %v1827
        %v1913 = vadd.f32 %v1685, %v1831
        %v1914 = vadd.f32 %v1686, %v1833
        %v1915 = vadd.f32 %v1687, %v1837
        %v1916 = vadd.f32 %v1688, %v1839
        %v1917 = vadd.f32 %v1689, %v1843
        %v1918 = vadd.f32 %v1690, %v1845
        %v1919 = vadd.f32 %v1691, %v1849
        %v1920 = vadd.f32 %v1692, %v1851
        %v1921 = vadd.f32 %v1693, %v1855
        %v1922 = vadd.f32 %v1694, %v1857
        %v1923 = vadd.f32 %v1695, %v1861
        %v1924 = vadd.f32 %v1696, %v1863
        %v1925 = vadd.f32 %v1697, %v1867
        %v1926 = vadd.f32 %v1698, %v1869
        %v1927 = vadd.f32 %v1699, %v1873
        %v1928 = vadd.f32 %v1700, %v1875
        %v1929 = vadd.f32 %v1701, %v1879
        %v1930 = vadd.f32 %v1702, %v1881
        %v1931 = vadd.f32 %v1703, %v1885
        %v1932 = vadd.f32 %v1704, %v1887
        %v1933 = vadd.f32 %v1705, %v1891
        %v1934 = vadd.f32 %v1706, %v1893
        %v1935 = vadd.f32 %v1707, %v1897
        %v1936 = vadd.f32 %v1708, %v1899
        %v1937 = vadd.f32 %v1709, %v1903
        %v1938 = vadd.f32 %v1710, %v1905
        %1939 = vst [vmem:[#allocation4] sm:$0xff] %v1907
        %1940 = vst [vmem:[#allocation4 + $0x8] sm:$0xff] %v1908
        %1941 = vst [vmem:[#allocation4 + $0x10] sm:$0xff] %v1909
        %1942 = vst [vmem:[#allocation4 + $0x18] sm:$0xff] %v1910
        %1943 = vst [vmem:[#allocation4 + $0x20] sm:$0xff] %v1911
        %1944 = vst [vmem:[#allocation4 + $0x28] sm:$0xff] %v1912
        %1945 = vst [vmem:[#allocation4 + $0x30] sm:$0xff] %v1913
        %1946 = vst [vmem:[#allocation4 + $0x38] sm:$0xff] %v1914
        %1947 = vst [vmem:[#allocation4 + $0x40] sm:$0xff] %v1915
        %1948 = vst [vmem:[#allocation4 + $0x48] sm:$0xff] %v1916
        %1949 = vst [vmem:[#allocation4 + $0x50] sm:$0xff] %v1917
        %1950 = vst [vmem:[#allocation4 + $0x58] sm:$0xff] %v1918
        %1951 = vst [vmem:[#allocation4 + $0x60] sm:$0xff] %v1919
        %1952 = vst [vmem:[#allocation4 + $0x68] sm:$0xff] %v1920
        %1953 = vst [vmem:[#allocation4 + $0x70] sm:$0xff] %v1921
        %1954 = vst [vmem:[#allocation4 + $0x78] sm:$0xff] %v1922
        %1955 = vst [vmem:[#allocation4 + $0x80] sm:$0xff] %v1923
        %1956 = vst [vmem:[#allocation4 + $0x88] sm:$0xff] %v1924
        %1957 = vst [vmem:[#allocation4 + $0x90] sm:$0xff] %v1925
        %1958 = vst [vmem:[#allocation4 + $0x98] sm:$0xff] %v1926
        %1959 = vst [vmem:[#allocation4 + $0xa0] sm:$0xff] %v1927
        %1960 = vst [vmem:[#allocation4 + $0xa8] sm:$0xff] %v1928
        %1961 = vst [vmem:[#allocation4 + $0xb0] sm:$0xff] %v1929
        %1962 = vst [vmem:[#allocation4 + $0xb8] sm:$0xff] %v1930
        %1963 = vst [vmem:[#allocation4 + $0xc0] sm:$0xff] %v1931
        %1964 = vst [vmem:[#allocation4 + $0xc8] sm:$0xff] %v1932
        %1965 = vst [vmem:[#allocation4 + $0xd0] sm:$0xff] %v1933
        %1966 = vst [vmem:[#allocation4 + $0xd8] sm:$0xff] %v1934
        %1967 = vst [vmem:[#allocation4 + $0xe0] sm:$0xff] %v1935
        %1968 = vst [vmem:[#allocation4 + $0xe8] sm:$0xff] %v1936
        %1969 = vst [vmem:[#allocation4 + $0xf0] sm:$0xff] %v1937
        %1970 = vst [vmem:[#allocation4 + $0xf8] sm:$0xff] %v1938
        %p1971 = scmp.eq.s32.totalorder %s41, 1
        // Predicated region
        $region109: #{tpu_custom_call.1} parent=59 // pred_check
          %p1972 = pneg %p1971
        $region110: #{tpu_custom_call.1} parent=59 // pred_check_branch
          %1974 = sbr.rel (%p1972) target = $region112
        $region111: #{tpu_custom_call.1} parent=59 // pred_region
          %v1975 = vld [vmem:[#allocation4] sm:$0xff]
          %v1976 = vld [vmem:[#allocation4 + $0x8] sm:$0xff]
          %v1977 = vld [vmem:[#allocation4 + $0x10] sm:$0xff]
          %v1978 = vld [vmem:[#allocation4 + $0x18] sm:$0xff]
          %v1979 = vld [vmem:[#allocation4 + $0x20] sm:$0xff]
          %v1980 = vld [vmem:[#allocation4 + $0x28] sm:$0xff]
          %v1981 = vld [vmem:[#allocation4 + $0x30] sm:$0xff]
          %v1982 = vld [vmem:[#allocation4 + $0x38] sm:$0xff]
          %v1983 = vld [vmem:[#allocation4 + $0x40] sm:$0xff]
          %v1984 = vld [vmem:[#allocation4 + $0x48] sm:$0xff]
          %v1985 = vld [vmem:[#allocation4 + $0x50] sm:$0xff]
          %v1986 = vld [vmem:[#allocation4 + $0x58] sm:$0xff]
          %v1987 = vld [vmem:[#allocation4 + $0x60] sm:$0xff]
          %v1988 = vld [vmem:[#allocation4 + $0x68] sm:$0xff]
          %v1989 = vld [vmem:[#allocation4 + $0x70] sm:$0xff]
          %v1990 = vld [vmem:[#allocation4 + $0x78] sm:$0xff]
          %v1991 = vld [vmem:[#allocation4 + $0x80] sm:$0xff]
          %v1992 = vld [vmem:[#allocation4 + $0x88] sm:$0xff]
          %v1993 = vld [vmem:[#allocation4 + $0x90] sm:$0xff]
          %v1994 = vld [vmem:[#allocation4 + $0x98] sm:$0xff]
          %v1995 = vld [vmem:[#allocation4 + $0xa0] sm:$0xff]
          %v1996 = vld [vmem:[#allocation4 + $0xa8] sm:$0xff]
          %v1997 = vld [vmem:[#allocation4 + $0xb0] sm:$0xff]
          %v1998 = vld [vmem:[#allocation4 + $0xb8] sm:$0xff]
          %v1999 = vld [vmem:[#allocation4 + $0xc0] sm:$0xff]
          %v2000 = vld [vmem:[#allocation4 + $0xc8] sm:$0xff]
          %v2001 = vld [vmem:[#allocation4 + $0xd0] sm:$0xff]
          %v2002 = vld [vmem:[#allocation4 + $0xd8] sm:$0xff]
          %v2003 = vld [vmem:[#allocation4 + $0xe0] sm:$0xff]
          %v2004 = vld [vmem:[#allocation4 + $0xe8] sm:$0xff]
          %v2005 = vld [vmem:[#allocation4 + $0xf0] sm:$0xff]
          %v2006 = vld [vmem:[#allocation4 + $0xf8] sm:$0xff]
          %v2007 = vld [vmem:[#allocation20] sm:$0x3]
          %v2009 = vlaneseq
          %v2010 = vshrl.u32 %v2009, 7
          %v2011 = vsub.s32 0, %v2010
          %v2012 = vrot.slane %v2007, %v2011
          %v2013 = vlaneseq
          %v2014 = vshrl.u32 %v2013, 7
          %v2015 = vsub.s32 1, %v2014
          %v2016 = vrot.slane %v2007, %v2015
          %v2019 = vadd.f32 %v1975, %v2012
          %v2020 = vadd.f32 %v1976, %v2016
          %v2021 = vadd.f32 %v1977, %v2012
          %v2022 = vadd.f32 %v1978, %v2016
          %v2023 = vadd.f32 %v1979, %v2012
          %v2024 = vadd.f32 %v1980, %v2016
          %v2025 = vadd.f32 %v1981, %v2012
          %v2026 = vadd.f32 %v1982, %v2016
          %v2027 = vadd.f32 %v1983, %v2012
          %v2028 = vadd.f32 %v1984, %v2016
          %v2029 = vadd.f32 %v1985, %v2012
          %v2030 = vadd.f32 %v1986, %v2016
          %v2031 = vadd.f32 %v1987, %v2012
          %v2032 = vadd.f32 %v1988, %v2016
          %v2033 = vadd.f32 %v1989, %v2012
          %v2034 = vadd.f32 %v1990, %v2016
          %v2035 = vadd.f32 %v1991, %v2012
          %v2036 = vadd.f32 %v1992, %v2016
          %v2037 = vadd.f32 %v1993, %v2012
          %v2038 = vadd.f32 %v1994, %v2016
          %v2039 = vadd.f32 %v1995, %v2012
          %v2040 = vadd.f32 %v1996, %v2016
          %v2041 = vadd.f32 %v1997, %v2012
          %v2042 = vadd.f32 %v1998, %v2016
          %v2043 = vadd.f32 %v1999, %v2012
          %v2044 = vadd.f32 %v2000, %v2016
          %v2045 = vadd.f32 %v2001, %v2012
          %v2046 = vadd.f32 %v2002, %v2016
          %v2047 = vadd.f32 %v2003, %v2012
          %v2048 = vadd.f32 %v2004, %v2016
          %v2049 = vadd.f32 %v2005, %v2012
          %v2050 = vadd.f32 %v2006, %v2016
          %2051 = vst [vmem:[%s557] sm:$0xff] %v2019
          %2052 = vst [vmem:[%s557 + $0x8] sm:$0xff] %v2020
          %2053 = vst [vmem:[%s557 + $0x10] sm:$0xff] %v2021
          %2054 = vst [vmem:[%s557 + $0x18] sm:$0xff] %v2022
          %2055 = vst [vmem:[%s557 + $0x20] sm:$0xff] %v2023
          %2056 = vst [vmem:[%s557 + $0x28] sm:$0xff] %v2024
          %2057 = vst [vmem:[%s557 + $0x30] sm:$0xff] %v2025
          %2058 = vst [vmem:[%s557 + $0x38] sm:$0xff] %v2026
          %2059 = vst [vmem:[%s557 + $0x40] sm:$0xff] %v2027
          %2060 = vst [vmem:[%s557 + $0x48] sm:$0xff] %v2028
          %2061 = vst [vmem:[%s557 + $0x50] sm:$0xff] %v2029
          %2062 = vst [vmem:[%s557 + $0x58] sm:$0xff] %v2030
          %2063 = vst [vmem:[%s557 + $0x60] sm:$0xff] %v2031
          %2064 = vst [vmem:[%s557 + $0x68] sm:$0xff] %v2032
          %2065 = vst [vmem:[%s557 + $0x70] sm:$0xff] %v2033
          %2066 = vst [vmem:[%s557 + $0x78] sm:$0xff] %v2034
          %2067 = vst [vmem:[%s557 + $0x80] sm:$0xff] %v2035
          %2068 = vst [vmem:[%s557 + $0x88] sm:$0xff] %v2036
          %2069 = vst [vmem:[%s557 + $0x90] sm:$0xff] %v2037
          %2070 = vst [vmem:[%s557 + $0x98] sm:$0xff] %v2038
          %2071 = vst [vmem:[%s557 + $0xa0] sm:$0xff] %v2039
          %2072 = vst [vmem:[%s557 + $0xa8] sm:$0xff] %v2040
          %2073 = vst [vmem:[%s557 + $0xb0] sm:$0xff] %v2041
          %2074 = vst [vmem:[%s557 + $0xb8] sm:$0xff] %v2042
          %2075 = vst [vmem:[%s557 + $0xc0] sm:$0xff] %v2043
          %2076 = vst [vmem:[%s557 + $0xc8] sm:$0xff] %v2044
          %2077 = vst [vmem:[%s557 + $0xd0] sm:$0xff] %v2045
          %2078 = vst [vmem:[%s557 + $0xd8] sm:$0xff] %v2046
          %2079 = vst [vmem:[%s557 + $0xe0] sm:$0xff] %v2047
          %2080 = vst [vmem:[%s557 + $0xe8] sm:$0xff] %v2048
          %2081 = vst [vmem:[%s557 + $0xf0] sm:$0xff] %v2049
          %2082 = vst [vmem:[%s557 + $0xf8] sm:$0xff] %v2050
        $region112: #{tpu_custom_call.1} parent=59 // pred_fallthru
          _
        %s2083 = sand.u32 %s285, 1
        %s2084 = scalar_lea.sflag [#allocation7], %s2083
        %s2085 = sand.u32 %s285, 1
        %s2086 = smul.addr %s2085, 256
        %s2087 = scalar_lea.vmem [#allocation22], %s2086
        // Predicated region
        $region113: #{tpu_custom_call.1} parent=59 // pred_check
          %p2088 = pneg %p295
        $region114: #{tpu_custom_call.1} parent=59 // pred_check_branch
          %2090 = sbr.rel (%p2088) target = $region116
        $region115: #{tpu_custom_call.1} parent=59 // pred_region
          %s2091 = smul.u32 16, %s40
          %s2093 = ssub.s32 4096, 4096
          %2094 = vsyncadd %s2084, %s2093
          %s2095 = smul.addr %s2091, 2
          %s2096 = smul.addr %s39, 32
          %s2097 = sadd.s32 %s2095, %s2096
          %s2098 = smul.addr %s2097, 128
          %s2099 = scalar_lea.hbm %s10, %s2098
          %s2100 = sshll.u32 %s2087, 4
          %s2101 = int_to_ptr.vmem [resolvable:$true] %s2100
          %2106 = dma.vmem_to_hbm [thread:$0]  %s2101, 4096, %s2099, %s2084, 256, 256, 16
        $region116: #{tpu_custom_call.1} parent=59 // pred_fallthru
          _
      $region60: #{tpu_custom_call.1} parent=5 // pred_fallthru
        _
      %p2107 = scmp.le.s32.totalorder 2, %s29
      // Predicated region
      $region117: #{tpu_custom_call.1} parent=5 // pred_check
        %p2108 = pneg %p2107
      $region118: #{tpu_custom_call.1} parent=5 // pred_check_branch
        %2110 = sbr.rel (%p2108) target = $region120
      $region119: #{tpu_custom_call.1} parent=5 // pred_region
        %s2111 = ssub.s32 %s29, 2
        // Predicated region
        $region121: #{tpu_custom_call.1} parent=119 // pred_check
          %p2112 = pneg %p301
        $region122: #{tpu_custom_call.1} parent=119 // pred_check_branch
          %2114 = sbr.rel (%p2112) target = $region124
        $region123: #{tpu_custom_call.1} parent=119 // pred_region
          %s2115 = sand.u32 %s286, 1
          %s2116 = scalar_lea.sflag [#allocation7], %s2115
          %s2117 = sand.u32 %s286, 1
          %s2118 = smul.addr %s2117, 256
          %s2119 = scalar_lea.vmem [#allocation22], %s2118
          %2120 = dma.done %s2116, 4096
        $region124: #{tpu_custom_call.1} parent=119 // pred_fallthru
          _
      $region120: #{tpu_custom_call.1} parent=5 // pred_fallthru
        _
    $region6: #{tpu_custom_call.1} parent=1 // loop_footer
      %s33 = sadd.s32 1, %s29
    $region7: #{tpu_custom_call.1} parent=1 // loop_footer_branch
      %28 = sbr.rel target = $region3
    $region8: #{tpu_custom_call.1} parent=1 // loop_exit
      _
    %2121 = vsyncpa [#allocation6], 1
    %s2122 = scalar_lea.sflag [#allocation6], 1
    %2123 = vsyncpa %s2122, 1
    %2124 = vsyncpa [#allocation9], 1
    %s2125 = scalar_lea.sflag [#allocation9], 1
    %2126 = vsyncpa %s2125, 1
    %2127 = vsyncpa [#allocation12], 1
    %2128 = vsyncpa [#allocation15], 1
    %2129 = vsyncpa [#allocation18], 1
    %2130 = vsyncpa [#allocation21], 1
    %2131 = vsyncpa [#allocation7], 1
    %s2132 = scalar_lea.sflag [#allocation7], 1
    %2133 = vsyncpa %s2132, 1

</llo_original>
